<compile_context>
chip_gen: v7x
topology: tpu7x:2x2x1
jax: 0.10.0
libtpu: 0.0.40
codegen_flags: <defaults>
</compile_context>

<pallas_src>
import functools

import jax
import jax.numpy as jnp
from jax.experimental import pallas as pl
from jax.experimental.pallas import tpu as pltpu

# ----------------------------- model dimensions ------------------------------
VOCAB = 64          # synthetic vocab
MAX_POS = 32        # max positions
H = 32              # hidden size      (bert-base: 768)
NH = 4              # attention heads  (bert-base: 12)
HD = H // NH        # head dim
FFN = 64            # intermediate size (bert-base: 3072)
NUM_CLASSES = 5     # num_classes argument of SequenceLabeling
C_PAD = 128         # lane-dense classifier width (sliced back to NUM_CLASSES outside)
DROP_P = 0.2        # nn.Dropout(0.2)
LN_EPS = 1e-12      # BERT layernorm eps
TB = 1              # sequences per grid step (tile unit: whole sequences, attention-safe)

# rows of the packed parameter-vector slab, shape (N_VEC, 128)
(R_EMB_G, R_EMB_B, R_BQKV, R_BO, R_LN1_G, R_LN1_B,
 R_B1, R_B2, R_LN2_G, R_LN2_B, R_CLS_B) = range(11)
N_VEC = 11


def _layernorm(x, gamma, beta):
    mu = jnp.mean(x, axis=-1, keepdims=True)
    var = jnp.mean((x - mu) ** 2, axis=-1, keepdims=True)
    return (x - mu) * jax.lax.rsqrt(var + LN_EPS) * gamma + beta


def _vrow(vecs_ref, row, width):
    # static (1, width) slice out of the packed parameter-vector slab
    return vecs_ref[row:row + 1, 0:width]


# ------------------ single fused kernel: encoder + dropout/linear/relu -------
def fused_kernel(seed_ref, x_ref, mask_ref, vecs_ref,
                 wqkv_ref, wo_ref, w1_ref, w2_ref, wcls_ref,
                 out_ref, *, tb, seq, training):
    rows = tb * seq
    x = x_ref[...].astype(jnp.float32)                           # (rows, H) summed embeddings
    x = _layernorm(x, _vrow(vecs_ref, R_EMB_G, H), _vrow(vecs_ref, R_EMB_B, H))

    # fused QKV: one (rows, H) @ (H, 3H) matmul; bf16 operands, f32 accumulation
    qkv = (jnp.dot(x.astype(jnp.bfloat16), wqkv_ref[...],
                   preferred_element_type=jnp.float32)
           + _vrow(vecs_ref, R_BQKV, 3 * H))
    scale = 1.0 / (HD ** 0.5)
    q3 = ((qkv[:, 0:H] * scale).reshape(tb, seq, H)).astype(jnp.bfloat16)
    k3 = qkv[:, H:2 * H].reshape(tb, seq, H).astype(jnp.bfloat16)
    v3 = qkv[:, 2 * H:3 * H].reshape(tb, seq, H).astype(jnp.bfloat16)

    # additive attention-mask bias built in-kernel from the int32 mask: (tb, 1, S)
    mbias = (1.0 - mask_ref[...].astype(jnp.float32)) * -1e9

    # per-head scores stacked along a cheap leading axis -> (NH, tb, S, S)
    s_all = jnp.stack(
        [jnp.einsum('bqd,bkd->bqk',
                    q3[:, :, h * HD:(h + 1) * HD],
                    k3[:, :, h * HD:(h + 1) * HD],
                    preferred_element_type=jnp.float32)
         for h in range(NH)], axis=0)
    s_all = s_all + mbias[None]                                  # broadcast over heads/rows

    # ONE fused softmax over the whole head-batched slab (denominator on the EUP)
    s_all = s_all - jnp.max(s_all, axis=-1, keepdims=True)
    p_all = jnp.exp(s_all)
    p_all = p_all * pl.reciprocal(jnp.sum(p_all, axis=-1, keepdims=True), approx=True)
    p_all = p_all.astype(jnp.bfloat16)

    # per-head context folded straight into head-major Wo (NH, HD, H): no lane concat
    attn = _vrow(vecs_ref, R_BO, H)                              # (1, H) bias, broadcasts
    for h in range(NH):
        ctx_h = jnp.einsum('bqk,bkd->bqd', p_all[h],
                           v3[:, :, h * HD:(h + 1) * HD],
                           preferred_element_type=jnp.float32)   # (tb, S, HD) f32
        attn = attn + jnp.dot(ctx_h.reshape(rows, HD).astype(jnp.bfloat16),
                              wo_ref[h],
                              preferred_element_type=jnp.float32)

    h1 = _layernorm(x + attn, _vrow(vecs_ref, R_LN1_G, H), _vrow(vecs_ref, R_LN1_B, H))
    f = (jnp.dot(h1.astype(jnp.bfloat16), w1_ref[...],
                 preferred_element_type=jnp.float32)
         + _vrow(vecs_ref, R_B1, FFN))
    # TODO(synk): HF BERT uses exact erf GELU; tanh approximation kept (known-good lowering).
    f = jax.nn.gelu(f, approximate=True)
    f = (jnp.dot(f.astype(jnp.bfloat16), w2_ref[...],
                 preferred_element_type=jnp.float32)
         + _vrow(vecs_ref, R_B2, H))
    h2 = _layernorm(h1 + f, _vrow(vecs_ref, R_LN2_G, H), _vrow(vecs_ref, R_LN2_B, H))

    # head: dropout -> linear(H -> C_PAD, lane-dense) -> relu
    if training:
        # per-grid-step seed so tiles get independent dropout masks
        pltpu.prng_seed(seed_ref[0] + pl.program_id(0))
        bits = pltpu.bitcast(pltpu.prng_random_bits(h2.shape), jnp.uint32)
        thr = jnp.uint32(int(DROP_P * (2 ** 32)))
        keep = (bits >= thr).astype(jnp.float32)
        h2 = h2 * keep * (1.0 / (1.0 - DROP_P))
    y = (jnp.dot(h2.astype(jnp.bfloat16), wcls_ref[...],
                 preferred_element_type=jnp.float32)
         + vecs_ref[R_CLS_B:R_CLS_B + 1, :])
    out_ref[...] = jnp.maximum(y, 0.0).astype(out_ref.dtype)     # .relu()


# ------------------------------- wrapper --------------------------------------
def sequence_labeling_forward(params, input_ids, mask, token_type_ids,
                              training=False, seed=0):
    B, S = input_ids.shape
    # Embedding gather stays in plain JAX (glue); sums are tiny.
    we = params["word_emb"][input_ids]                           # (B, S, H)
    pe = params["pos_emb"][jnp.arange(S)][None]                  # (1, S, H)
    te = params["type_emb"][token_type_ids]                      # (B, S, H)
    x_emb = (we + pe + te).astype(jnp.float32).reshape(B * S, H)
    mask3 = mask.astype(jnp.int32).reshape(B, 1, S)

    nb = pl.cdiv(B, TB)                                          # >= 2 parallel steps
    kernel = functools.partial(fused_kernel, tb=TB, seq=S, training=training)

    out = pl.pallas_call(
        kernel,
        out_shape=jax.ShapeDtypeStruct((B * S, C_PAD), jnp.float32),
        grid_spec=pltpu.PrefetchScalarGridSpec(
            num_scalar_prefetch=1,              # dropout seed (SMEM)
            grid=(nb,),                         # tiled over sequence blocks (pipelined)
            in_specs=[
                # tiled activations / mask (double-buffered by the BlockSpec pipeline)
                pl.BlockSpec((TB * S, H), lambda i, s: (i, 0)),
                pl.BlockSpec((TB, 1, S), lambda i, s: (i, 0, 0)),
                # VMEM-resident parameters: constant index map -> fetched once
                pl.BlockSpec((N_VEC, 128), lambda i, s: (0, 0)),     # packed LN/bias slab
                pl.BlockSpec((H, 3 * H), lambda i, s: (0, 0)),       # fused Wqkv (bf16)
                pl.BlockSpec((NH, HD, H), lambda i, s: (0, 0, 0)),   # Wo head-major (bf16)
                pl.BlockSpec((H, FFN), lambda i, s: (0, 0)),         # W1 (bf16)
                pl.BlockSpec((FFN, H), lambda i, s: (0, 0)),         # W2 (bf16)
                pl.BlockSpec((H, C_PAD), lambda i, s: (0, 0)),       # classifier (bf16)
            ],
            out_specs=pl.BlockSpec((TB * S, C_PAD), lambda i, s: (i, 0))),
        compiler_params=pltpu.CompilerParams(
            dimension_semantics=("parallel",),
            vmem_limit_bytes=32 * 1024 * 1024),   # explicit budget (safe on v5e/v6e/v7x)
    )(jnp.array([seed], jnp.int32), x_emb, mask3,
      params["vecs"], params["wqkv"], params["wo"], params["w1"], params["w2"],
      params["wcls"])
    return out.reshape(B, S, C_PAD)[:, :, :NUM_CLASSES]          # slice lane padding off


def init_params(key):
    ks = jax.random.split(key, 10)
    init = lambda k, shp: (0.02 * jax.random.normal(k, shp)).astype(jnp.float32)
    bf16 = lambda a: a.astype(jnp.bfloat16)

    # packed parameter-vector slab: LN gammas = 1, all biases / betas = 0
    vecs = jnp.zeros((N_VEC, 128), jnp.float32)
    vecs = vecs.at[R_EMB_G, :H].set(1.0)
    vecs = vecs.at[R_LN1_G, :H].set(1.0)
    vecs = vecs.at[R_LN2_G, :H].set(1.0)

    wq, wk, wv = init(ks[3], (H, H)), init(ks[4], (H, H)), init(ks[5], (H, H))
    cls_w = init(ks[9], (H, NUM_CLASSES))

    return dict(
        word_emb=init(ks[0], (VOCAB, H)),
        pos_emb=init(ks[1], (MAX_POS, H)),
        type_emb=init(ks[2], (2, H)),
        vecs=vecs,
        wqkv=bf16(jnp.concatenate([wq, wk, wv], axis=1)),        # (H, 3H) fused QKV, bf16
        wo=bf16(init(ks[6], (H, H)).reshape(NH, HD, H)),         # head-major Wo, bf16
        w1=bf16(init(ks[7], (H, FFN))),
        w2=bf16(init(ks[8], (FFN, H))),
        wcls=bf16(jnp.zeros((H, C_PAD), jnp.float32).at[:, :NUM_CLASSES].set(cls_w)),
    )


if __name__ == "__main__":
    key = jax.random.PRNGKey(0)
    pkey, dkey = jax.random.split(key)
    params = init_params(pkey)

    B, S = 2, 8
    input_ids = jax.random.randint(dkey, (B, S), 0, VOCAB, dtype=jnp.int32)
    mask = jnp.array([[1, 1, 1, 1, 1, 1, 1, 1],
                      [1, 1, 1, 1, 1, 1, 0, 0]], jnp.int32)
    token_type_ids = jnp.zeros((B, S), jnp.int32)

    logits = sequence_labeling_forward(params, input_ids, mask, token_type_ids,
                                       training=False)  # eval: dropout is identity
    logits = jax.block_until_ready(logits)
    assert logits.shape == (B, S, NUM_CLASSES)
    assert bool(jnp.all(logits >= 0.0))  # relu output
    print("KERNEL_OK")
</pallas_src>

<mosaic_0001>
module attributes {stable_mosaic.version = 11 : i64} {
  func.func @fused_kernel(%arg0: i32, %arg1: memref<1xi32, #tpu.memory_space<smem>>, %arg2: memref<8x32xf32, #tpu.memory_space<vmem>>, %arg3: memref<1x1x8xi32, #tpu.memory_space<vmem>>, %arg4: memref<11x128xf32, #tpu.memory_space<vmem>>, %arg5: memref<32x96xbf16, #tpu.memory_space<vmem>>, %arg6: memref<4x8x32xbf16, #tpu.memory_space<vmem>>, %arg7: memref<32x64xbf16, #tpu.memory_space<vmem>>, %arg8: memref<64x32xbf16, #tpu.memory_space<vmem>>, %arg9: memref<32x128xbf16, #tpu.memory_space<vmem>>, %arg10: memref<8x128xf32, #tpu.memory_space<vmem>>) attributes {dimension_semantics = [#tpu.dimension_semantics<parallel>], iteration_bounds = array<i64: 2>, scalar_prefetch = 1 : i64, scratch_operands = 0 : i64, tpu.core_type = #tpu.core_type<tc>, window_params = [{transform_indices = @transform_0, window_bounds = array<i64: 8, 32>}, {transform_indices = @transform_1, window_bounds = array<i64: 1, 1, 8>}, {pipeline_mode = #tpu.pipeline_mode<synchronous>, transform_indices = @transform_2, window_bounds = array<i64: 11, 128>}, {pipeline_mode = #tpu.pipeline_mode<synchronous>, transform_indices = @transform_3, window_bounds = array<i64: 32, 96>}, {pipeline_mode = #tpu.pipeline_mode<synchronous>, transform_indices = @transform_4, window_bounds = array<i64: 4, 8, 32>}, {pipeline_mode = #tpu.pipeline_mode<synchronous>, transform_indices = @transform_5, window_bounds = array<i64: 32, 64>}, {pipeline_mode = #tpu.pipeline_mode<synchronous>, transform_indices = @transform_6, window_bounds = array<i64: 64, 32>}, {pipeline_mode = #tpu.pipeline_mode<synchronous>, transform_indices = @transform_7, window_bounds = array<i64: 32, 128>}, {transform_indices = @transform_8, window_bounds = array<i64: 8, 128>}]} {
    %c0 = arith.constant 0 : index
    %c0_0 = arith.constant 0 : index
    %0 = vector.load %arg2[%c0, %c0_0] : memref<8x32xf32, #tpu.memory_space<vmem>>, vector<8x32xf32>
    %c0_1 = arith.constant 0 : index
    %c0_2 = arith.constant 0 : index
    %1 = vector.load %arg4[%c0_1, %c0_2] : memref<11x128xf32, #tpu.memory_space<vmem>>, vector<1x32xf32>
    %c1 = arith.constant 1 : index
    %c0_3 = arith.constant 0 : index
    %2 = vector.load %arg4[%c1, %c0_3] : memref<11x128xf32, #tpu.memory_space<vmem>>, vector<1x32xf32>
    %cst = arith.constant dense<0.000000e+00> : vector<8xf32>
    %3 = vector.multi_reduction <add>, %0, %cst [1] : vector<8x32xf32> to vector<8xf32>
    %4 = vector.shape_cast %3 : vector<8xf32> to vector<8x1xf32>
    %cst_4 = arith.constant 3.200000e+01 : f32
    %5 = vector.broadcast %cst_4 : f32 to vector<8x1xf32>
    %6 = arith.divf %4, %5 : vector<8x1xf32>
    %7 = vector.broadcast %6 : vector<8x1xf32> to vector<8x32xf32>
    %8 = arith.subf %0, %7 : vector<8x32xf32>
    %9 = arith.mulf %8, %8 : vector<8x32xf32>
    %cst_5 = arith.constant dense<0.000000e+00> : vector<8xf32>
    %10 = vector.multi_reduction <add>, %9, %cst_5 [1] : vector<8x32xf32> to vector<8xf32>
    %11 = vector.shape_cast %10 : vector<8xf32> to vector<8x1xf32>
    %cst_6 = arith.constant 3.200000e+01 : f32
    %12 = vector.broadcast %cst_6 : f32 to vector<8x1xf32>
    %13 = arith.divf %11, %12 : vector<8x1xf32>
    %14 = vector.broadcast %6 : vector<8x1xf32> to vector<8x32xf32>
    %15 = arith.subf %0, %14 : vector<8x32xf32>
    %cst_7 = arith.constant 9.99999996E-13 : f32
    %16 = vector.broadcast %cst_7 : f32 to vector<8x1xf32>
    %17 = arith.addf %13, %16 : vector<8x1xf32>
    %18 = math.rsqrt %17 : vector<8x1xf32>
    %19 = vector.broadcast %18 : vector<8x1xf32> to vector<8x32xf32>
    %20 = arith.mulf %15, %19 : vector<8x32xf32>
    %21 = vector.broadcast %1 : vector<1x32xf32> to vector<8x32xf32>
    %22 = arith.mulf %20, %21 : vector<8x32xf32>
    %23 = vector.broadcast %2 : vector<1x32xf32> to vector<8x32xf32>
    %24 = arith.addf %22, %23 : vector<8x32xf32>
    %25 = arith.truncf %24 : vector<8x32xf32> to vector<8x32xbf16>
    %c0_8 = arith.constant 0 : index
    %c0_9 = arith.constant 0 : index
    %26 = vector.load %arg5[%c0_8, %c0_9] : memref<32x96xbf16, #tpu.memory_space<vmem>>, vector<32x96xbf16>
    %cst_10 = arith.constant dense<0.000000e+00> : vector<8x96xf32>
    %27 = tpu.matmul %25, %26, %cst_10 {dimension_numbers = #tpu.dot_dimension_numbers<[1], [0], [0], [1], [0, 0, 1, 1], [], []>} : vector<8x32xbf16>, vector<32x96xbf16>, vector<8x96xf32> -> vector<8x96xf32>
    %c2 = arith.constant 2 : index
    %c0_11 = arith.constant 0 : index
    %28 = vector.load %arg4[%c2, %c0_11] : memref<11x128xf32, #tpu.memory_space<vmem>>, vector<1x96xf32>
    %29 = vector.broadcast %28 : vector<1x96xf32> to vector<8x96xf32>
    %30 = arith.addf %27, %29 : vector<8x96xf32>
    %31 = vector.extract_strided_slice %30 {offsets = [0, 0], sizes = [8, 32], strides = [1, 1]} : vector<8x96xf32> to vector<8x32xf32>
    %cst_12 = arith.constant 0.353553385 : f32
    %32 = vector.broadcast %cst_12 : f32 to vector<8x32xf32>
    %33 = arith.mulf %31, %32 : vector<8x32xf32>
    %34 = vector.shape_cast %33 : vector<8x32xf32> to vector<1x8x32xf32>
    %35 = arith.truncf %34 : vector<1x8x32xf32> to vector<1x8x32xbf16>
    %36 = vector.extract_strided_slice %30 {offsets = [0, 32], sizes = [8, 32], strides = [1, 1]} : vector<8x96xf32> to vector<8x32xf32>
    %37 = vector.shape_cast %36 : vector<8x32xf32> to vector<1x8x32xf32>
    %38 = arith.truncf %37 : vector<1x8x32xf32> to vector<1x8x32xbf16>
    %39 = vector.extract_strided_slice %30 {offsets = [0, 64], sizes = [8, 32], strides = [1, 1]} : vector<8x96xf32> to vector<8x32xf32>
    %40 = vector.shape_cast %39 : vector<8x32xf32> to vector<1x8x32xf32>
    %41 = arith.truncf %40 : vector<1x8x32xf32> to vector<1x8x32xbf16>
    %c0_13 = arith.constant 0 : index
    %c0_14 = arith.constant 0 : index
    %c0_15 = arith.constant 0 : index
    %42 = vector.load %arg3[%c0_13, %c0_14, %c0_15] : memref<1x1x8xi32, #tpu.memory_space<vmem>>, vector<1x1x8xi32>
    %43 = arith.sitofp %42 : vector<1x1x8xi32> to vector<1x1x8xf32>
    %cst_16 = arith.constant 1.000000e+00 : f32
    %44 = vector.broadcast %cst_16 : f32 to vector<1x1x8xf32>
    %45 = arith.subf %44, %43 : vector<1x1x8xf32>
    %cst_17 = arith.constant -1.000000e+09 : f32
    %46 = vector.broadcast %cst_17 : f32 to vector<1x1x8xf32>
    %47 = arith.mulf %45, %46 : vector<1x1x8xf32>
    %48 = vector.extract_strided_slice %35 {offsets = [0, 0, 0], sizes = [1, 8, 8], strides = [1, 1, 1]} : vector<1x8x32xbf16> to vector<1x8x8xbf16>
    %49 = vector.extract_strided_slice %38 {offsets = [0, 0, 0], sizes = [1, 8, 8], strides = [1, 1, 1]} : vector<1x8x32xbf16> to vector<1x8x8xbf16>
    "tpu.trace_start"() <{level = 10 : i32, message = "bqd,bkd->bqk"}> : () -> ()
    %cst_18 = arith.constant dense<0.000000e+00> : vector<1x8x8xf32>
    %50 = tpu.matmul %48, %49, %cst_18 {dimension_numbers = #tpu.dot_dimension_numbers<[2], [2], [1], [1], [0, 0, 0, 1, 1, 1], [0], [0]>} : vector<1x8x8xbf16>, vector<1x8x8xbf16>, vector<1x8x8xf32> -> vector<1x8x8xf32>
    "tpu.trace_stop"() : () -> ()
    %51 = vector.extract_strided_slice %35 {offsets = [0, 0, 8], sizes = [1, 8, 8], strides = [1, 1, 1]} : vector<1x8x32xbf16> to vector<1x8x8xbf16>
    %52 = vector.extract_strided_slice %38 {offsets = [0, 0, 8], sizes = [1, 8, 8], strides = [1, 1, 1]} : vector<1x8x32xbf16> to vector<1x8x8xbf16>
    "tpu.trace_start"() <{level = 10 : i32, message = "bqd,bkd->bqk"}> : () -> ()
    %cst_19 = arith.constant dense<0.000000e+00> : vector<1x8x8xf32>
    %53 = tpu.matmul %51, %52, %cst_19 {dimension_numbers = #tpu.dot_dimension_numbers<[2], [2], [1], [1], [0, 0, 0, 1, 1, 1], [0], [0]>} : vector<1x8x8xbf16>, vector<1x8x8xbf16>, vector<1x8x8xf32> -> vector<1x8x8xf32>
    "tpu.trace_stop"() : () -> ()
    %54 = vector.extract_strided_slice %35 {offsets = [0, 0, 16], sizes = [1, 8, 8], strides = [1, 1, 1]} : vector<1x8x32xbf16> to vector<1x8x8xbf16>
    %55 = vector.extract_strided_slice %38 {offsets = [0, 0, 16], sizes = [1, 8, 8], strides = [1, 1, 1]} : vector<1x8x32xbf16> to vector<1x8x8xbf16>
    "tpu.trace_start"() <{level = 10 : i32, message = "bqd,bkd->bqk"}> : () -> ()
    %cst_20 = arith.constant dense<0.000000e+00> : vector<1x8x8xf32>
    %56 = tpu.matmul %54, %55, %cst_20 {dimension_numbers = #tpu.dot_dimension_numbers<[2], [2], [1], [1], [0, 0, 0, 1, 1, 1], [0], [0]>} : vector<1x8x8xbf16>, vector<1x8x8xbf16>, vector<1x8x8xf32> -> vector<1x8x8xf32>
    "tpu.trace_stop"() : () -> ()
    %57 = vector.extract_strided_slice %35 {offsets = [0, 0, 24], sizes = [1, 8, 8], strides = [1, 1, 1]} : vector<1x8x32xbf16> to vector<1x8x8xbf16>
    %58 = vector.extract_strided_slice %38 {offsets = [0, 0, 24], sizes = [1, 8, 8], strides = [1, 1, 1]} : vector<1x8x32xbf16> to vector<1x8x8xbf16>
    "tpu.trace_start"() <{level = 10 : i32, message = "bqd,bkd->bqk"}> : () -> ()
    %cst_21 = arith.constant dense<0.000000e+00> : vector<1x8x8xf32>
    %59 = tpu.matmul %57, %58, %cst_21 {dimension_numbers = #tpu.dot_dimension_numbers<[2], [2], [1], [1], [0, 0, 0, 1, 1, 1], [0], [0]>} : vector<1x8x8xbf16>, vector<1x8x8xbf16>, vector<1x8x8xf32> -> vector<1x8x8xf32>
    "tpu.trace_stop"() : () -> ()
    %60 = vector.shape_cast %50 : vector<1x8x8xf32> to vector<1x1x8x8xf32>
    %61 = vector.shape_cast %53 : vector<1x8x8xf32> to vector<1x1x8x8xf32>
    %62 = vector.shape_cast %56 : vector<1x8x8xf32> to vector<1x1x8x8xf32>
    %63 = vector.shape_cast %59 : vector<1x8x8xf32> to vector<1x1x8x8xf32>
    %64 = tpu.concatenate %60, %61, %62, %63 in 0 : vector<1x1x8x8xf32>, vector<1x1x8x8xf32>, vector<1x1x8x8xf32>, vector<1x1x8x8xf32> -> vector<4x1x8x8xf32>
    %65 = vector.shape_cast %47 : vector<1x1x8xf32> to vector<1x1x1x8xf32>
    %66 = vector.broadcast %65 : vector<1x1x1x8xf32> to vector<4x1x8x8xf32>
    %67 = arith.addf %64, %66 : vector<4x1x8x8xf32>
    %cst_22 = arith.constant dense<0xFF800000> : vector<4x1x8xf32>
    %68 = vector.multi_reduction <maximumf>, %67, %cst_22 [3] : vector<4x1x8x8xf32> to vector<4x1x8xf32>
    %69 = vector.shape_cast %68 : vector<4x1x8xf32> to vector<4x1x8x1xf32>
    %70 = vector.broadcast %69 : vector<4x1x8x1xf32> to vector<4x1x8x8xf32>
    %71 = arith.subf %67, %70 : vector<4x1x8x8xf32>
    %72 = math.exp %71 : vector<4x1x8x8xf32>
    %cst_23 = arith.constant dense<0.000000e+00> : vector<4x1x8xf32>
    %73 = vector.multi_reduction <add>, %72, %cst_23 [3] : vector<4x1x8x8xf32> to vector<4x1x8xf32>
    %74 = vector.shape_cast %73 : vector<4x1x8xf32> to vector<4x1x8x1xf32>
    %75 = tpu.reciprocal %74 {approx = true} : vector<4x1x8x1xf32> -> vector<4x1x8x1xf32>
    %76 = vector.broadcast %75 : vector<4x1x8x1xf32> to vector<4x1x8x8xf32>
    %77 = arith.mulf %72, %76 : vector<4x1x8x8xf32>
    %78 = arith.truncf %77 : vector<4x1x8x8xf32> to vector<4x1x8x8xbf16>
    %c3 = arith.constant 3 : index
    %c0_24 = arith.constant 0 : index
    %79 = vector.load %arg4[%c3, %c0_24] : memref<11x128xf32, #tpu.memory_space<vmem>>, vector<1x32xf32>
    %80 = vector.extract_strided_slice %78 {offsets = [0, 0, 0, 0], sizes = [1, 1, 8, 8], strides = [1, 1, 1, 1]} : vector<4x1x8x8xbf16> to vector<1x1x8x8xbf16>
    %81 = vector.shape_cast %80 : vector<1x1x8x8xbf16> to vector<1x8x8xbf16>
    %82 = vector.extract_strided_slice %41 {offsets = [0, 0, 0], sizes = [1, 8, 8], strides = [1, 1, 1]} : vector<1x8x32xbf16> to vector<1x8x8xbf16>
    "tpu.trace_start"() <{level = 10 : i32, message = "bqk,bkd->bqd"}> : () -> ()
    %cst_25 = arith.constant dense<0.000000e+00> : vector<1x8x8xf32>
    %83 = tpu.matmul %81, %82, %cst_25 {dimension_numbers = #tpu.dot_dimension_numbers<[2], [1], [1], [2], [0, 0, 0, 1, 1, 2], [0], [0]>} : vector<1x8x8xbf16>, vector<1x8x8xbf16>, vector<1x8x8xf32> -> vector<1x8x8xf32>
    "tpu.trace_stop"() : () -> ()
    %84 = vector.shape_cast %83 : vector<1x8x8xf32> to vector<8x8xf32>
    %85 = arith.truncf %84 : vector<8x8xf32> to vector<8x8xbf16>
    %c0_26 = arith.constant 0 : index
    %c0_27 = arith.constant 0 : index
    %c0_28 = arith.constant 0 : index
    %86 = vector.load %arg6[%c0_26, %c0_27, %c0_28] : memref<4x8x32xbf16, #tpu.memory_space<vmem>>, vector<1x8x32xbf16>
    %87 = vector.shape_cast %86 : vector<1x8x32xbf16> to vector<8x32xbf16>
    %cst_29 = arith.constant dense<0.000000e+00> : vector<8x32xf32>
    %88 = tpu.matmul %85, %87, %cst_29 {dimension_numbers = #tpu.dot_dimension_numbers<[1], [0], [0], [1], [0, 0, 1, 1], [], []>} : vector<8x8xbf16>, vector<8x32xbf16>, vector<8x32xf32> -> vector<8x32xf32>
    %89 = vector.broadcast %79 : vector<1x32xf32> to vector<8x32xf32>
    %90 = arith.addf %89, %88 : vector<8x32xf32>
    %91 = vector.extract_strided_slice %78 {offsets = [1, 0, 0, 0], sizes = [1, 1, 8, 8], strides = [1, 1, 1, 1]} : vector<4x1x8x8xbf16> to vector<1x1x8x8xbf16>
    %92 = vector.shape_cast %91 : vector<1x1x8x8xbf16> to vector<1x8x8xbf16>
    %93 = vector.extract_strided_slice %41 {offsets = [0, 0, 8], sizes = [1, 8, 8], strides = [1, 1, 1]} : vector<1x8x32xbf16> to vector<1x8x8xbf16>
    "tpu.trace_start"() <{level = 10 : i32, message = "bqk,bkd->bqd"}> : () -> ()
    %cst_30 = arith.constant dense<0.000000e+00> : vector<1x8x8xf32>
    %94 = tpu.matmul %92, %93, %cst_30 {dimension_numbers = #tpu.dot_dimension_numbers<[2], [1], [1], [2], [0, 0, 0, 1, 1, 2], [0], [0]>} : vector<1x8x8xbf16>, vector<1x8x8xbf16>, vector<1x8x8xf32> -> vector<1x8x8xf32>
    "tpu.trace_stop"() : () -> ()
    %95 = vector.shape_cast %94 : vector<1x8x8xf32> to vector<8x8xf32>
    %96 = arith.truncf %95 : vector<8x8xf32> to vector<8x8xbf16>
    %c1_31 = arith.constant 1 : index
    %c0_32 = arith.constant 0 : index
    %c0_33 = arith.constant 0 : index
    %97 = vector.load %arg6[%c1_31, %c0_32, %c0_33] : memref<4x8x32xbf16, #tpu.memory_space<vmem>>, vector<1x8x32xbf16>
    %98 = vector.shape_cast %97 : vector<1x8x32xbf16> to vector<8x32xbf16>
    %cst_34 = arith.constant dense<0.000000e+00> : vector<8x32xf32>
    %99 = tpu.matmul %96, %98, %cst_34 {dimension_numbers = #tpu.dot_dimension_numbers<[1], [0], [0], [1], [0, 0, 1, 1], [], []>} : vector<8x8xbf16>, vector<8x32xbf16>, vector<8x32xf32> -> vector<8x32xf32>
    %100 = arith.addf %90, %99 : vector<8x32xf32>
    %101 = vector.extract_strided_slice %78 {offsets = [2, 0, 0, 0], sizes = [1, 1, 8, 8], strides = [1, 1, 1, 1]} : vector<4x1x8x8xbf16> to vector<1x1x8x8xbf16>
    %102 = vector.shape_cast %101 : vector<1x1x8x8xbf16> to vector<1x8x8xbf16>
    %103 = vector.extract_strided_slice %41 {offsets = [0, 0, 16], sizes = [1, 8, 8], strides = [1, 1, 1]} : vector<1x8x32xbf16> to vector<1x8x8xbf16>
    "tpu.trace_start"() <{level = 10 : i32, message = "bqk,bkd->bqd"}> : () -> ()
    %cst_35 = arith.constant dense<0.000000e+00> : vector<1x8x8xf32>
    %104 = tpu.matmul %102, %103, %cst_35 {dimension_numbers = #tpu.dot_dimension_numbers<[2], [1], [1], [2], [0, 0, 0, 1, 1, 2], [0], [0]>} : vector<1x8x8xbf16>, vector<1x8x8xbf16>, vector<1x8x8xf32> -> vector<1x8x8xf32>
    "tpu.trace_stop"() : () -> ()
    %105 = vector.shape_cast %104 : vector<1x8x8xf32> to vector<8x8xf32>
    %106 = arith.truncf %105 : vector<8x8xf32> to vector<8x8xbf16>
    %c2_36 = arith.constant 2 : index
    %c0_37 = arith.constant 0 : index
    %c0_38 = arith.constant 0 : index
    %107 = vector.load %arg6[%c2_36, %c0_37, %c0_38] : memref<4x8x32xbf16, #tpu.memory_space<vmem>>, vector<1x8x32xbf16>
    %108 = vector.shape_cast %107 : vector<1x8x32xbf16> to vector<8x32xbf16>
    %cst_39 = arith.constant dense<0.000000e+00> : vector<8x32xf32>
    %109 = tpu.matmul %106, %108, %cst_39 {dimension_numbers = #tpu.dot_dimension_numbers<[1], [0], [0], [1], [0, 0, 1, 1], [], []>} : vector<8x8xbf16>, vector<8x32xbf16>, vector<8x32xf32> -> vector<8x32xf32>
    %110 = arith.addf %100, %109 : vector<8x32xf32>
    %111 = vector.extract_strided_slice %78 {offsets = [3, 0, 0, 0], sizes = [1, 1, 8, 8], strides = [1, 1, 1, 1]} : vector<4x1x8x8xbf16> to vector<1x1x8x8xbf16>
    %112 = vector.shape_cast %111 : vector<1x1x8x8xbf16> to vector<1x8x8xbf16>
    %113 = vector.extract_strided_slice %41 {offsets = [0, 0, 24], sizes = [1, 8, 8], strides = [1, 1, 1]} : vector<1x8x32xbf16> to vector<1x8x8xbf16>
    "tpu.trace_start"() <{level = 10 : i32, message = "bqk,bkd->bqd"}> : () -> ()
    %cst_40 = arith.constant dense<0.000000e+00> : vector<1x8x8xf32>
    %114 = tpu.matmul %112, %113, %cst_40 {dimension_numbers = #tpu.dot_dimension_numbers<[2], [1], [1], [2], [0, 0, 0, 1, 1, 2], [0], [0]>} : vector<1x8x8xbf16>, vector<1x8x8xbf16>, vector<1x8x8xf32> -> vector<1x8x8xf32>
    "tpu.trace_stop"() : () -> ()
    %115 = vector.shape_cast %114 : vector<1x8x8xf32> to vector<8x8xf32>
    %116 = arith.truncf %115 : vector<8x8xf32> to vector<8x8xbf16>
    %c3_41 = arith.constant 3 : index
    %c0_42 = arith.constant 0 : index
    %c0_43 = arith.constant 0 : index
    %117 = vector.load %arg6[%c3_41, %c0_42, %c0_43] : memref<4x8x32xbf16, #tpu.memory_space<vmem>>, vector<1x8x32xbf16>
    %118 = vector.shape_cast %117 : vector<1x8x32xbf16> to vector<8x32xbf16>
    %cst_44 = arith.constant dense<0.000000e+00> : vector<8x32xf32>
    %119 = tpu.matmul %116, %118, %cst_44 {dimension_numbers = #tpu.dot_dimension_numbers<[1], [0], [0], [1], [0, 0, 1, 1], [], []>} : vector<8x8xbf16>, vector<8x32xbf16>, vector<8x32xf32> -> vector<8x32xf32>
    %120 = arith.addf %110, %119 : vector<8x32xf32>
    %121 = arith.addf %24, %120 : vector<8x32xf32>
    %c4 = arith.constant 4 : index
    %c0_45 = arith.constant 0 : index
    %122 = vector.load %arg4[%c4, %c0_45] : memref<11x128xf32, #tpu.memory_space<vmem>>, vector<1x32xf32>
    %c5 = arith.constant 5 : index
    %c0_46 = arith.constant 0 : index
    %123 = vector.load %arg4[%c5, %c0_46] : memref<11x128xf32, #tpu.memory_space<vmem>>, vector<1x32xf32>
    %cst_47 = arith.constant dense<0.000000e+00> : vector<8xf32>
    %124 = vector.multi_reduction <add>, %121, %cst_47 [1] : vector<8x32xf32> to vector<8xf32>
    %125 = vector.shape_cast %124 : vector<8xf32> to vector<8x1xf32>
    %cst_48 = arith.constant 3.200000e+01 : f32
    %126 = vector.broadcast %cst_48 : f32 to vector<8x1xf32>
    %127 = arith.divf %125, %126 : vector<8x1xf32>
    %128 = vector.broadcast %127 : vector<8x1xf32> to vector<8x32xf32>
    %129 = arith.subf %121, %128 : vector<8x32xf32>
    %130 = arith.mulf %129, %129 : vector<8x32xf32>
    %cst_49 = arith.constant dense<0.000000e+00> : vector<8xf32>
    %131 = vector.multi_reduction <add>, %130, %cst_49 [1] : vector<8x32xf32> to vector<8xf32>
    %132 = vector.shape_cast %131 : vector<8xf32> to vector<8x1xf32>
    %cst_50 = arith.constant 3.200000e+01 : f32
    %133 = vector.broadcast %cst_50 : f32 to vector<8x1xf32>
    %134 = arith.divf %132, %133 : vector<8x1xf32>
    %135 = vector.broadcast %127 : vector<8x1xf32> to vector<8x32xf32>
    %136 = arith.subf %121, %135 : vector<8x32xf32>
    %cst_51 = arith.constant 9.99999996E-13 : f32
    %137 = vector.broadcast %cst_51 : f32 to vector<8x1xf32>
    %138 = arith.addf %134, %137 : vector<8x1xf32>
    %139 = math.rsqrt %138 : vector<8x1xf32>
    %140 = vector.broadcast %139 : vector<8x1xf32> to vector<8x32xf32>
    %141 = arith.mulf %136, %140 : vector<8x32xf32>
    %142 = vector.broadcast %122 : vector<1x32xf32> to vector<8x32xf32>
    %143 = arith.mulf %141, %142 : vector<8x32xf32>
    %144 = vector.broadcast %123 : vector<1x32xf32> to vector<8x32xf32>
    %145 = arith.addf %143, %144 : vector<8x32xf32>
    %146 = arith.truncf %145 : vector<8x32xf32> to vector<8x32xbf16>
    %c0_52 = arith.constant 0 : index
    %c0_53 = arith.constant 0 : index
    %147 = vector.load %arg7[%c0_52, %c0_53] : memref<32x64xbf16, #tpu.memory_space<vmem>>, vector<32x64xbf16>
    %cst_54 = arith.constant dense<0.000000e+00> : vector<8x64xf32>
    %148 = tpu.matmul %146, %147, %cst_54 {dimension_numbers = #tpu.dot_dimension_numbers<[1], [0], [0], [1], [0, 0, 1, 1], [], []>} : vector<8x32xbf16>, vector<32x64xbf16>, vector<8x64xf32> -> vector<8x64xf32>
    %c6 = arith.constant 6 : index
    %c0_55 = arith.constant 0 : index
    %149 = vector.load %arg4[%c6, %c0_55] : memref<11x128xf32, #tpu.memory_space<vmem>>, vector<1x64xf32>
    %150 = vector.broadcast %149 : vector<1x64xf32> to vector<8x64xf32>
    %151 = arith.addf %148, %150 : vector<8x64xf32>
    %152 = arith.mulf %151, %151 : vector<8x64xf32>
    %153 = arith.mulf %151, %152 : vector<8x64xf32>
    %cst_56 = arith.constant 4.471500e-02 : f32
    %154 = vector.broadcast %cst_56 : f32 to vector<8x64xf32>
    %155 = arith.mulf %154, %153 : vector<8x64xf32>
    %156 = arith.addf %151, %155 : vector<8x64xf32>
    %cst_57 = arith.constant 0.797884583 : f32
    %157 = vector.broadcast %cst_57 : f32 to vector<8x64xf32>
    %158 = arith.mulf %157, %156 : vector<8x64xf32>
    %159 = math.tanh %158 : vector<8x64xf32>
    %cst_58 = arith.constant 1.000000e+00 : f32
    %160 = vector.broadcast %cst_58 : f32 to vector<8x64xf32>
    %161 = arith.addf %160, %159 : vector<8x64xf32>
    %cst_59 = arith.constant 5.000000e-01 : f32
    %162 = vector.broadcast %cst_59 : f32 to vector<8x64xf32>
    %163 = arith.mulf %162, %161 : vector<8x64xf32>
    %164 = arith.mulf %151, %163 : vector<8x64xf32>
    %165 = arith.truncf %164 : vector<8x64xf32> to vector<8x64xbf16>
    %c0_60 = arith.constant 0 : index
    %c0_61 = arith.constant 0 : index
    %166 = vector.load %arg8[%c0_60, %c0_61] : memref<64x32xbf16, #tpu.memory_space<vmem>>, vector<64x32xbf16>
    %cst_62 = arith.constant dense<0.000000e+00> : vector<8x32xf32>
    %167 = tpu.matmul %165, %166, %cst_62 {dimension_numbers = #tpu.dot_dimension_numbers<[1], [0], [0], [1], [0, 0, 1, 1], [], []>} : vector<8x64xbf16>, vector<64x32xbf16>, vector<8x32xf32> -> vector<8x32xf32>
    %c7 = arith.constant 7 : index
    %c0_63 = arith.constant 0 : index
    %168 = vector.load %arg4[%c7, %c0_63] : memref<11x128xf32, #tpu.memory_space<vmem>>, vector<1x32xf32>
    %169 = vector.broadcast %168 : vector<1x32xf32> to vector<8x32xf32>
    %170 = arith.addf %167, %169 : vector<8x32xf32>
    %171 = arith.addf %145, %170 : vector<8x32xf32>
    %c8 = arith.constant 8 : index
    %c0_64 = arith.constant 0 : index
    %172 = vector.load %arg4[%c8, %c0_64] : memref<11x128xf32, #tpu.memory_space<vmem>>, vector<1x32xf32>
    %c9 = arith.constant 9 : index
    %c0_65 = arith.constant 0 : index
    %173 = vector.load %arg4[%c9, %c0_65] : memref<11x128xf32, #tpu.memory_space<vmem>>, vector<1x32xf32>
    %cst_66 = arith.constant dense<0.000000e+00> : vector<8xf32>
    %174 = vector.multi_reduction <add>, %171, %cst_66 [1] : vector<8x32xf32> to vector<8xf32>
    %175 = vector.shape_cast %174 : vector<8xf32> to vector<8x1xf32>
    %cst_67 = arith.constant 3.200000e+01 : f32
    %176 = vector.broadcast %cst_67 : f32 to vector<8x1xf32>
    %177 = arith.divf %175, %176 : vector<8x1xf32>
    %178 = vector.broadcast %177 : vector<8x1xf32> to vector<8x32xf32>
    %179 = arith.subf %171, %178 : vector<8x32xf32>
    %180 = arith.mulf %179, %179 : vector<8x32xf32>
    %cst_68 = arith.constant dense<0.000000e+00> : vector<8xf32>
    %181 = vector.multi_reduction <add>, %180, %cst_68 [1] : vector<8x32xf32> to vector<8xf32>
    %182 = vector.shape_cast %181 : vector<8xf32> to vector<8x1xf32>
    %cst_69 = arith.constant 3.200000e+01 : f32
    %183 = vector.broadcast %cst_69 : f32 to vector<8x1xf32>
    %184 = arith.divf %182, %183 : vector<8x1xf32>
    %185 = vector.broadcast %177 : vector<8x1xf32> to vector<8x32xf32>
    %186 = arith.subf %171, %185 : vector<8x32xf32>
    %cst_70 = arith.constant 9.99999996E-13 : f32
    %187 = vector.broadcast %cst_70 : f32 to vector<8x1xf32>
    %188 = arith.addf %184, %187 : vector<8x1xf32>
    %189 = math.rsqrt %188 : vector<8x1xf32>
    %190 = vector.broadcast %189 : vector<8x1xf32> to vector<8x32xf32>
    %191 = arith.mulf %186, %190 : vector<8x32xf32>
    %192 = vector.broadcast %172 : vector<1x32xf32> to vector<8x32xf32>
    %193 = arith.mulf %191, %192 : vector<8x32xf32>
    %194 = vector.broadcast %173 : vector<1x32xf32> to vector<8x32xf32>
    %195 = arith.addf %193, %194 : vector<8x32xf32>
    %196 = arith.truncf %195 : vector<8x32xf32> to vector<8x32xbf16>
    %c0_71 = arith.constant 0 : index
    %c0_72 = arith.constant 0 : index
    %197 = vector.load %arg9[%c0_71, %c0_72] : memref<32x128xbf16, #tpu.memory_space<vmem>>, vector<32x128xbf16>
    %cst_73 = arith.constant dense<0.000000e+00> : vector<8x128xf32>
    %198 = tpu.matmul %196, %197, %cst_73 {dimension_numbers = #tpu.dot_dimension_numbers<[1], [0], [0], [1], [0, 0, 1, 1], [], []>} : vector<8x32xbf16>, vector<32x128xbf16>, vector<8x128xf32> -> vector<8x128xf32>
    %c10 = arith.constant 10 : index
    %c0_74 = arith.constant 0 : index
    %199 = vector.load %arg4[%c10, %c0_74] : memref<11x128xf32, #tpu.memory_space<vmem>>, vector<1x128xf32>
    %200 = vector.broadcast %199 : vector<1x128xf32> to vector<8x128xf32>
    %201 = arith.addf %198, %200 : vector<8x128xf32>
    %cst_75 = arith.constant 0.000000e+00 : f32
    %202 = vector.broadcast %cst_75 : f32 to vector<8x128xf32>
    %203 = arith.maximumf %201, %202 : vector<8x128xf32>
    %c0_76 = arith.constant 0 : index
    %c0_77 = arith.constant 0 : index
    %204 = vector.load %arg10[%c0_76, %c0_77] : memref<8x128xf32, #tpu.memory_space<vmem>>, vector<8x128xf32>
    tpu.vector_store %arg10[%c0_76, %c0_77], %203 {strides = array<i32>} : memref<8x128xf32, #tpu.memory_space<vmem>>, vector<8x128xf32>,
    return
  }
  func.func @transform_0(%arg0: i32, %arg1: memref<1xi32, #tpu.memory_space<smem>>) -> (i32, i32) {
    %c0_i32 = arith.constant 0 : i32
    %c0_i32_0 = arith.constant 0 : i32
    return %arg0, %c0_i32 : i32, i32
  }
  func.func @transform_1(%arg0: i32, %arg1: memref<1xi32, #tpu.memory_space<smem>>) -> (i32, i32, i32) {
    %c0_i32 = arith.constant 0 : i32
    %c0_i32_0 = arith.constant 0 : i32
    %c0_i32_1 = arith.constant 0 : i32
    return %arg0, %c0_i32, %c0_i32_0 : i32, i32, i32
  }
  func.func @transform_2(%arg0: i32, %arg1: memref<1xi32, #tpu.memory_space<smem>>) -> (i32, i32) {
    %c0_i32 = arith.constant 0 : i32
    %c0_i32_0 = arith.constant 0 : i32
    %c0_i32_1 = arith.constant 0 : i32
    return %c0_i32, %c0_i32_0 : i32, i32
  }
  func.func @transform_3(%arg0: i32, %arg1: memref<1xi32, #tpu.memory_space<smem>>) -> (i32, i32) {
    %c0_i32 = arith.constant 0 : i32
    %c0_i32_0 = arith.constant 0 : i32
    %c0_i32_1 = arith.constant 0 : i32
    return %c0_i32, %c0_i32_0 : i32, i32
  }
  func.func @transform_4(%arg0: i32, %arg1: memref<1xi32, #tpu.memory_space<smem>>) -> (i32, i32, i32) {
    %c0_i32 = arith.constant 0 : i32
    %c0_i32_0 = arith.constant 0 : i32
    %c0_i32_1 = arith.constant 0 : i32
    %c0_i32_2 = arith.constant 0 : i32
    return %c0_i32, %c0_i32_0, %c0_i32_1 : i32, i32, i32
  }
  func.func @transform_5(%arg0: i32, %arg1: memref<1xi32, #tpu.memory_space<smem>>) -> (i32, i32) {
    %c0_i32 = arith.constant 0 : i32
    %c0_i32_0 = arith.constant 0 : i32
    %c0_i32_1 = arith.constant 0 : i32
    return %c0_i32, %c0_i32_0 : i32, i32
  }
  func.func @transform_6(%arg0: i32, %arg1: memref<1xi32, #tpu.memory_space<smem>>) -> (i32, i32) {
    %c0_i32 = arith.constant 0 : i32
    %c0_i32_0 = arith.constant 0 : i32
    %c0_i32_1 = arith.constant 0 : i32
    return %c0_i32, %c0_i32_0 : i32, i32
  }
  func.func @transform_7(%arg0: i32, %arg1: memref<1xi32, #tpu.memory_space<smem>>) -> (i32, i32) {
    %c0_i32 = arith.constant 0 : i32
    %c0_i32_0 = arith.constant 0 : i32
    %c0_i32_1 = arith.constant 0 : i32
    return %c0_i32, %c0_i32_0 : i32, i32
  }
  func.func @transform_8(%arg0: i32, %arg1: memref<1xi32, #tpu.memory_space<smem>>) -> (i32, i32) {
    %c0_i32 = arith.constant 0 : i32
    %c0_i32_0 = arith.constant 0 : i32
    return %arg0, %c0_i32 : i32, i32
  }
}

</mosaic_0001>

<llo_original>
// kernel: tpu_custom_call.1
$region0: #{tpu_custom_call.1}
  #allocation0 [shape = 'u32[]', space=smem, size = 0x4, offset = 0x4, fixed_abs, tag = 'smem constant byte address 0x4 - core index']
  #allocation1 [shape = 'u32[144,128]{1,0:T(1,128)}', space=vmem, size = 0x12000, scoped, tag = 'internal scratch']
  #allocation2 [shape = 's32[1]{0}', space=sflag, size = 0x4, scoped, tag = 'scoped memory for tpu_custom_call.1']
  #allocation3 [shape = 's32[1]{0:T(128)S(6)}', space=smem, size = 0x200, scoped, tag = 'prefetched SMEM operand 0']
  %s0 = inlined_call_operand.<no memory space> [shape: s32[1], index: 0, kind: input, shape index: {}]
  %s1 = inlined_call_operand.vmem [shape: f32[16,32], index: 1, kind: input, shape index: {}]
  %s2 = inlined_call_operand.vmem [shape: s32[2,1,8], index: 2, kind: input, shape index: {}]
  %s3 = inlined_call_operand.vmem [shape: f32[11,128], index: 3, kind: input, shape index: {}]
  %s4 = inlined_call_operand.vmem [shape: bf16[32,96], index: 4, kind: input, shape index: {}]
  %s5 = inlined_call_operand.hbm [shape: bf16[4,8,32], index: 5, kind: input, shape index: {}]
  %s6 = inlined_call_operand.hbm [shape: bf16[32,64], index: 6, kind: input, shape index: {}]
  %s7 = inlined_call_operand.vmem [shape: bf16[64,32], index: 7, kind: input, shape index: {}]
  %s8 = inlined_call_operand.hbm [shape: bf16[32,128], index: 8, kind: input, shape index: {}]
  %s9 = inlined_call_operand.hbm [shape: f32[16,128], index: 9, kind: output, shape index: {}]
  %s10 = sld [smem:[#allocation0]]
  $region77: #{tpu_custom_call.1} parent=0
    _
  %s12 = ssub.s32 1, %s10
  %s13 = scalar_select 0, %s12, %s10
  %14 = sst [smem:[#allocation3]] %s0
  $region1: #{tpu_custom_call.1} parent=0
    #allocation4 [shape = 'u8[8192]{0}', space=vmem, size = 0x2000, scoped, tag = 'input window, operand 5, single buffered']
    #allocation5 [shape = 's32[2]{0}', space=sflag, size = 0x8, scoped, tag = 'scoped memory for tpu_custom_call.1']
    #allocation6 [shape = 's32[2]{0}', space=sflag, size = 0x8, scoped, tag = 'scoped memory for tpu_custom_call.1']
    #allocation7 [shape = 'u8[8192]{0}', space=vmem, size = 0x2000, scoped, tag = 'input window, operand 6, single buffered']
    #allocation8 [shape = 's32[1]{0}', space=sflag, size = 0x4, scoped, tag = 'scoped memory for tpu_custom_call.1']
    #allocation9 [shape = 'u8[8192]{0}', space=vmem, size = 0x2000, scoped, tag = 'input window, operand 8, single buffered']
    #allocation10 [shape = 'u8[8192]{0}', space=vmem, size = 0x2000, scoped, tag = 'output window, operand 0']
    %15 = vsyncpa [#allocation5], 0
    %16 = vsyncpa [#allocation8], 0
    %17 = vsyncpa [#allocation6], 0
    %s18 = scalar_lea.sflag [#allocation6], 1
    %19 = vsyncpa %s18, 0
    loop: start=0, step=1, limit=4
    $region2: #{tpu_custom_call.1} parent=1 // loop_pre_header
      _
    $region3: #{tpu_custom_call.1} parent=1 // loop_header
      %s21 = sphi 0, %s25
      %p22 = scmp.ge.s32.totalorder %s21, 4
      %s31 = sphi 0, %s33
      %s34 = sphi 0, %s31
      %s35 = sphi 0, %s34
      %s51 = sphi 0, %s35
      %s57 = sphi 0, %s59
      %s60 = sphi 0, %s57
      %s61 = sphi 0, %s60
      %s77 = sphi 0, %s61
      %s81 = sphi 0, %s81
      %s83 = sphi 0, %s81
      %s84 = sphi 0, %s83
      %s98 = sphi 0, %s84
      %s102 = sphi 0, %s102
      %s104 = sphi 0, %s102
      %s105 = sphi 0, %s104
      %s119 = sphi 0, %s105
      %s123 = sphi 0, %s123
      %s125 = sphi 0, %s123
      %s126 = sphi 0, %s125
      %s140 = sphi 0, %s126
      %s144 = sphi 0, %s144
      %s146 = sphi 0, %s144
      %s147 = sphi 0, %s146
      %s161 = sphi 0, %s147
      %s165 = sphi 0, %s165
      %s167 = sphi 0, %s165
      %s168 = sphi 0, %s167
      %s182 = sphi 0, %s168
      %s186 = sphi 0, %s186
      %s188 = sphi 0, %s186
      %s189 = sphi 0, %s188
      %s203 = sphi 0, %s189
      %s209 = sphi 0, %s211
      %s212 = sphi 0, %s209
      %s213 = sphi 0, %s212
      %s229 = sphi 0, %s213
    $region4: #{tpu_custom_call.1} parent=1 // loop_header_branch
      %24 = sbr.rel (%p22) target = $region8
    $region5: #{tpu_custom_call.1} parent=1 // loop_body
      %s26 = ssub.s32 %s21, 1
      %s27 = ssub.s32 %s21, 2
      %s28 = sadd.s32 %s21, 1
      %s29 = ssub.s32 %s21, %s28
      %p30 = scmp.eq.s32.totalorder %s29, 0
      %s32 = sadd.s32 %s31, 1
      %s33 = scalar_select %p30, %s31, %s32
      %p36 = pneg %p30
      %p37 = scmp.eq.s32.totalorder %s21, 1
      %p38 = por %p36, %p37
      %p39 = scmp.ne.s32.totalorder %s31, %s34
      %p40 = scmp.eq.s32.totalorder %s21, 0
      %p41 = por %p39, %p40
      %p42 = scmp.ne.s32.totalorder %s31, %s34
      %p43 = scmp.eq.s32.totalorder %s26, 1
      %p44 = por %p42, %p43
      %p45 = scmp.ne.s32.totalorder %s34, %s35
      %p46 = scmp.eq.s32.totalorder %s26, 0
      %p47 = por %p45, %p46
      %p48 = scmp.ne.s32.totalorder %s34, %s35
      %p49 = scmp.eq.s32.totalorder %s27, 1
      %p50 = por %p48, %p49
      %p52 = scmp.ne.s32.totalorder %s35, %s51
      %p53 = scmp.eq.s32.totalorder %s27, 0
      %p54 = por %p52, %p53
      %s55 = ssub.s32 %s21, %s28
      %p56 = scmp.eq.s32.totalorder %s55, 0
      %s58 = sadd.s32 %s57, 1
      %s59 = scalar_select %p56, %s57, %s58
      %p62 = pneg %p56
      %p63 = scmp.eq.s32.totalorder %s21, 1
      %p64 = por %p62, %p63
      %p65 = scmp.ne.s32.totalorder %s57, %s60
      %p66 = scmp.eq.s32.totalorder %s21, 0
      %p67 = por %p65, %p66
      %p68 = scmp.ne.s32.totalorder %s57, %s60
      %p69 = scmp.eq.s32.totalorder %s26, 1
      %p70 = por %p68, %p69
      %p71 = scmp.ne.s32.totalorder %s60, %s61
      %p72 = scmp.eq.s32.totalorder %s26, 0
      %p73 = por %p71, %p72
      %p74 = scmp.ne.s32.totalorder %s60, %s61
      %p75 = scmp.eq.s32.totalorder %s27, 1
      %p76 = por %p74, %p75
      %p78 = scmp.ne.s32.totalorder %s61, %s77
      %p79 = scmp.eq.s32.totalorder %s27, 0
      %p80 = por %p78, %p79
      %s82 = sadd.s32 %s81, 1
      %p85 = scmp.eq.s32.totalorder %s21, 1
      %p86 = scmp.ne.s32.totalorder %s81, %s83
      %p87 = scmp.eq.s32.totalorder %s21, 0
      %p88 = por %p86, %p87
      %p89 = scmp.ne.s32.totalorder %s81, %s83
      %p90 = scmp.eq.s32.totalorder %s26, 1
      %p91 = por %p89, %p90
      %p92 = scmp.ne.s32.totalorder %s83, %s84
      %p93 = scmp.eq.s32.totalorder %s26, 0
      %p94 = por %p92, %p93
      %p95 = scmp.ne.s32.totalorder %s83, %s84
      %p96 = scmp.eq.s32.totalorder %s27, 1
      %p97 = por %p95, %p96
      %p99 = scmp.ne.s32.totalorder %s84, %s98
      %p100 = scmp.eq.s32.totalorder %s27, 0
      %p101 = por %p99, %p100
      %s103 = sadd.s32 %s102, 1
      %p106 = scmp.eq.s32.totalorder %s21, 1
      %p107 = scmp.ne.s32.totalorder %s102, %s104
      %p108 = scmp.eq.s32.totalorder %s21, 0
      %p109 = por %p107, %p108
      %p110 = scmp.ne.s32.totalorder %s102, %s104
      %p111 = scmp.eq.s32.totalorder %s26, 1
      %p112 = por %p110, %p111
      %p113 = scmp.ne.s32.totalorder %s104, %s105
      %p114 = scmp.eq.s32.totalorder %s26, 0
      %p115 = por %p113, %p114
      %p116 = scmp.ne.s32.totalorder %s104, %s105
      %p117 = scmp.eq.s32.totalorder %s27, 1
      %p118 = por %p116, %p117
      %p120 = scmp.ne.s32.totalorder %s105, %s119
      %p121 = scmp.eq.s32.totalorder %s27, 0
      %p122 = por %p120, %p121
      %s124 = sadd.s32 %s123, 1
      %p127 = scmp.eq.s32.totalorder %s21, 1
      %p128 = scmp.ne.s32.totalorder %s123, %s125
      %p129 = scmp.eq.s32.totalorder %s21, 0
      %p130 = por %p128, %p129
      %p131 = scmp.ne.s32.totalorder %s123, %s125
      %p132 = scmp.eq.s32.totalorder %s26, 1
      %p133 = por %p131, %p132
      %p134 = scmp.ne.s32.totalorder %s125, %s126
      %p135 = scmp.eq.s32.totalorder %s26, 0
      %p136 = por %p134, %p135
      %p137 = scmp.ne.s32.totalorder %s125, %s126
      %p138 = scmp.eq.s32.totalorder %s27, 1
      %p139 = por %p137, %p138
      %p141 = scmp.ne.s32.totalorder %s126, %s140
      %p142 = scmp.eq.s32.totalorder %s27, 0
      %p143 = por %p141, %p142
      %s145 = sadd.s32 %s144, 1
      %p148 = scmp.eq.s32.totalorder %s21, 1
      %p149 = scmp.ne.s32.totalorder %s144, %s146
      %p150 = scmp.eq.s32.totalorder %s21, 0
      %p151 = por %p149, %p150
      %p152 = scmp.ne.s32.totalorder %s144, %s146
      %p153 = scmp.eq.s32.totalorder %s26, 1
      %p154 = por %p152, %p153
      %p155 = scmp.ne.s32.totalorder %s146, %s147
      %p156 = scmp.eq.s32.totalorder %s26, 0
      %p157 = por %p155, %p156
      %p158 = scmp.ne.s32.totalorder %s146, %s147
      %p159 = scmp.eq.s32.totalorder %s27, 1
      %p160 = por %p158, %p159
      %p162 = scmp.ne.s32.totalorder %s147, %s161
      %p163 = scmp.eq.s32.totalorder %s27, 0
      %p164 = por %p162, %p163
      %s166 = sadd.s32 %s165, 1
      %p169 = scmp.eq.s32.totalorder %s21, 1
      %p170 = scmp.ne.s32.totalorder %s165, %s167
      %p171 = scmp.eq.s32.totalorder %s21, 0
      %p172 = por %p170, %p171
      %p173 = scmp.ne.s32.totalorder %s165, %s167
      %p174 = scmp.eq.s32.totalorder %s26, 1
      %p175 = por %p173, %p174
      %p176 = scmp.ne.s32.totalorder %s167, %s168
      %p177 = scmp.eq.s32.totalorder %s26, 0
      %p178 = por %p176, %p177
      %p179 = scmp.ne.s32.totalorder %s167, %s168
      %p180 = scmp.eq.s32.totalorder %s27, 1
      %p181 = por %p179, %p180
      %p183 = scmp.ne.s32.totalorder %s168, %s182
      %p184 = scmp.eq.s32.totalorder %s27, 0
      %p185 = por %p183, %p184
      %s187 = sadd.s32 %s186, 1
      %p190 = scmp.eq.s32.totalorder %s21, 1
      %p191 = scmp.ne.s32.totalorder %s186, %s188
      %p192 = scmp.eq.s32.totalorder %s21, 0
      %p193 = por %p191, %p192
      %p194 = scmp.ne.s32.totalorder %s186, %s188
      %p195 = scmp.eq.s32.totalorder %s26, 1
      %p196 = por %p194, %p195
      %p197 = scmp.ne.s32.totalorder %s188, %s189
      %p198 = scmp.eq.s32.totalorder %s26, 0
      %p199 = por %p197, %p198
      %p200 = scmp.ne.s32.totalorder %s188, %s189
      %p201 = scmp.eq.s32.totalorder %s27, 1
      %p202 = por %p200, %p201
      %p204 = scmp.ne.s32.totalorder %s189, %s203
      %p205 = scmp.eq.s32.totalorder %s27, 0
      %p206 = por %p204, %p205
      %s207 = ssub.s32 %s21, %s28
      %p208 = scmp.eq.s32.totalorder %s207, 0
      %s210 = sadd.s32 %s209, 1
      %s211 = scalar_select %p208, %s209, %s210
      %p214 = pneg %p208
      %p215 = scmp.eq.s32.totalorder %s21, 1
      %p216 = por %p214, %p215
      %p217 = scmp.ne.s32.totalorder %s209, %s212
      %p218 = scmp.eq.s32.totalorder %s21, 0
      %p219 = por %p217, %p218
      %p220 = scmp.ne.s32.totalorder %s209, %s212
      %p221 = scmp.eq.s32.totalorder %s26, 1
      %p222 = por %p220, %p221
      %p223 = scmp.ne.s32.totalorder %s212, %s213
      %p224 = scmp.eq.s32.totalorder %s26, 0
      %p225 = por %p223, %p224
      %p226 = scmp.ne.s32.totalorder %s212, %s213
      %p227 = scmp.eq.s32.totalorder %s27, 1
      %p228 = por %p226, %p227
      %p230 = scmp.ne.s32.totalorder %s213, %s229
      %p231 = scmp.eq.s32.totalorder %s27, 0
      %p232 = por %p230, %p231
      %p233 = scmp.le.s32.totalorder 1, %s21
      %p234 = scmp.lt.s32.totalorder %s21, 3
      %p235 = pnand %p233, %p234
      %p236 = pneg %p235
      // Predicated region
      $region9: #{tpu_custom_call.1} parent=5 // pred_check
        _
      $region10: #{tpu_custom_call.1} parent=5 // pred_check_branch
        %238 = sbr.rel (%p235) target = $region12
      $region11: #{tpu_custom_call.1} parent=5 // pred_region
        %s239 = ssub.s32 %s21, 1
        // Predicated region
        $region13: #{tpu_custom_call.1} parent=11 // pred_check
          %p240 = pneg %p94
        $region14: #{tpu_custom_call.1} parent=11 // pred_check_branch
          %242 = sbr.rel (%p240) target = $region16
        $region15: #{tpu_custom_call.1} parent=11 // pred_region
          _
        $region16: #{tpu_custom_call.1} parent=11 // pred_fallthru
          _
        // Predicated region
        $region17: #{tpu_custom_call.1} parent=11 // pred_check
          %p243 = pneg %p115
        $region18: #{tpu_custom_call.1} parent=11 // pred_check_branch
          %245 = sbr.rel (%p243) target = $region20
        $region19: #{tpu_custom_call.1} parent=11 // pred_region
          _
        $region20: #{tpu_custom_call.1} parent=11 // pred_fallthru
          _
        // Predicated region
        $region21: #{tpu_custom_call.1} parent=11 // pred_check
          %p246 = pneg %p136
        $region22: #{tpu_custom_call.1} parent=11 // pred_check_branch
          %248 = sbr.rel (%p246) target = $region24
        $region23: #{tpu_custom_call.1} parent=11 // pred_region
          %s250 = ssub.s32 256, 256
          %251 = vsyncadd [#allocation5], %s250
          %s252 = sshll.u32 [#allocation4], 4
          %s253 = int_to_ptr.vmem [resolvable:$true] %s252
          %258 = dma.hbm_to_vmem [thread:$0]  %s5, 256, %s253, [#allocation5], 64, 64, 4
        $region24: #{tpu_custom_call.1} parent=11 // pred_fallthru
          _
        // Predicated region
        $region25: #{tpu_custom_call.1} parent=11 // pred_check
          %p259 = pneg %p157
        $region26: #{tpu_custom_call.1} parent=11 // pred_check_branch
          %261 = sbr.rel (%p259) target = $region28
        $region27: #{tpu_custom_call.1} parent=11 // pred_region
          %s263 = ssub.s32 256, 256
          %264 = vsyncadd [#allocation8], %s263
          %s265 = sshll.u32 [#allocation7], 4
          %s266 = int_to_ptr.vmem [resolvable:$true] %s265
          %271 = dma.hbm_to_vmem [thread:$0]  %s6, 256, %s266, [#allocation8], 64, 64, 4
        $region28: #{tpu_custom_call.1} parent=11 // pred_fallthru
          _
        // Predicated region
        $region29: #{tpu_custom_call.1} parent=11 // pred_check
          %p272 = pneg %p178
        $region30: #{tpu_custom_call.1} parent=11 // pred_check_branch
          %274 = sbr.rel (%p272) target = $region32
        $region31: #{tpu_custom_call.1} parent=11 // pred_region
          _
        $region32: #{tpu_custom_call.1} parent=11 // pred_fallthru
          _
        // Predicated region
        $region33: #{tpu_custom_call.1} parent=11 // pred_check
          %p275 = pneg %p199
        $region34: #{tpu_custom_call.1} parent=11 // pred_check_branch
          %277 = sbr.rel (%p275) target = $region36
        $region35: #{tpu_custom_call.1} parent=11 // pred_region
          %s279 = ssub.s32 256, 256
          %280 = vsyncadd [#allocation8], %s279
          %s281 = sshll.u32 [#allocation9], 4
          %s282 = int_to_ptr.vmem [resolvable:$true] %s281
          %287 = dma.hbm_to_vmem [thread:$0]  %s8, 256, %s282, [#allocation8], 64, 64, 4
        $region36: #{tpu_custom_call.1} parent=11 // pred_fallthru
          _
      $region12: #{tpu_custom_call.1} parent=5 // pred_fallthru
        _
      %p288 = scmp.lt.s32.totalorder %s21, 2
      // Predicated region
      $region37: #{tpu_custom_call.1} parent=5 // pred_check
        %p289 = pneg %p288
      $region38: #{tpu_custom_call.1} parent=5 // pred_check_branch
        %291 = sbr.rel (%p289) target = $region40
      $region39: #{tpu_custom_call.1} parent=5 // pred_region
        // Predicated region
        $region41: #{tpu_custom_call.1} parent=39 // pred_check
          %p292 = pneg %p41
        $region42: #{tpu_custom_call.1} parent=39 // pred_check_branch
          %294 = sbr.rel (%p292) target = $region44
        $region43: #{tpu_custom_call.1} parent=39 // pred_region
          %p295 = scmp.lt.s32.totalorder %s21, 1
          %s296 = scalar_select %p295, %s21, 1
          %s297 = smul.addr %s296, 8
          %s298 = scalar_lea.vmem %s1, %s297
        $region44: #{tpu_custom_call.1} parent=39 // pred_fallthru
          _
        // Predicated region
        $region45: #{tpu_custom_call.1} parent=39 // pred_check
          %p299 = pneg %p67
        $region46: #{tpu_custom_call.1} parent=39 // pred_check_branch
          %301 = sbr.rel (%p299) target = $region48
        $region47: #{tpu_custom_call.1} parent=39 // pred_region
          %p302 = scmp.lt.s32.totalorder %s21, 1
          %s303 = scalar_select %p302, %s21, 1
          %s304 = scalar_lea.vmem %s2, %s303
        $region48: #{tpu_custom_call.1} parent=39 // pred_fallthru
          _
      $region40: #{tpu_custom_call.1} parent=5 // pred_fallthru
        _
      %p305 = scmp.le.s32.totalorder 1, %s21
      %p306 = scmp.lt.s32.totalorder %s21, 3
      %p307 = pnand %p305, %p306
      %p308 = pneg %p307
      // Predicated region
      $region49: #{tpu_custom_call.1} parent=5 // pred_check
        _
      $region50: #{tpu_custom_call.1} parent=5 // pred_check_branch
        %310 = sbr.rel (%p307) target = $region52
      $region51: #{tpu_custom_call.1} parent=5 // pred_region
        %s311 = ssub.s32 %s21, 1
        // Predicated region
        $region53: #{tpu_custom_call.1} parent=51 // pred_check
          %p312 = pneg %p136
        $region54: #{tpu_custom_call.1} parent=51 // pred_check_branch
          %314 = sbr.rel (%p312) target = $region56
        $region55: #{tpu_custom_call.1} parent=51 // pred_region
          %315 = dma.done [#allocation5], 256
        $region56: #{tpu_custom_call.1} parent=51 // pred_fallthru
          _
        // Predicated region
        $region57: #{tpu_custom_call.1} parent=51 // pred_check
          %p316 = pneg %p157
        $region58: #{tpu_custom_call.1} parent=51 // pred_check_branch
          %318 = sbr.rel (%p316) target = $region60
        $region59: #{tpu_custom_call.1} parent=51 // pred_region
          %319 = dma.done [#allocation8], 256
        $region60: #{tpu_custom_call.1} parent=51 // pred_fallthru
          _
        // Predicated region
        $region61: #{tpu_custom_call.1} parent=51 // pred_check
          %p320 = pneg %p199
        $region62: #{tpu_custom_call.1} parent=51 // pred_check_branch
          %322 = sbr.rel (%p320) target = $region64
        $region63: #{tpu_custom_call.1} parent=51 // pred_region
          %323 = dma.done [#allocation8], 256
        $region64: #{tpu_custom_call.1} parent=51 // pred_fallthru
          _
        %p324 = scmp.lt.s32.totalorder %s26, 1
        %s325 = scalar_select %p324, %s26, 1
        %s326 = smul.addr %s325, 8
        %s327 = scalar_lea.vmem %s1, %s326
        %p328 = pneg %p47
        %p329 = pneg %p44
        %p330 = scmp.lt.s32.totalorder %s26, 1
        %s331 = scalar_select %p330, %s26, 1
        %s332 = scalar_lea.vmem %s2, %s331
        %p333 = pneg %p73
        %p334 = pneg %p70
        %p335 = pneg %p94
        %p336 = pneg %p91
        %p337 = pneg %p115
        %p338 = pneg %p112
        %p339 = pneg %p136
        %p340 = pneg %p133
        %p341 = pneg %p157
        %p342 = pneg %p154
        %p343 = pneg %p178
        %p344 = pneg %p175
        %p345 = pneg %p199
        %p346 = pneg %p196
        %p347 = pneg %p225
        %p348 = pneg %p222
        %s349 = sand.u32 %s212, 1
        %s350 = scalar_lea.sflag [#allocation6], %s349
        %s351 = sand.u32 %s212, 1
        %s352 = smul.addr %s351, 8
        %s353 = scalar_lea.vmem [#allocation10], %s352
        %p354 = scmp.lt.s32.totalorder %s26, 1
        %s355 = scalar_select %p354, %s26, 1
        %s356 = smul.addr %s355, 8
        %s357 = scalar_lea.vmem %s1, %s356
        %p358 = scmp.lt.s32.totalorder %s26, 1
        %s359 = scalar_select %p358, %s26, 1
        %s360 = scalar_lea.vmem %s2, %s359
        %v362 = vld [vmem:[%s357] sm:$0xff]
        %v363 = vld [vmem:[%s3] sm:$0x1]
        %v364 = vld [vmem:[%s3 + $0x1] sm:$0x1]
        %vm365 = vcmask 261120
        %v366 = vsel %vm365, %v362, 0.0
        %367 = vadd.xlane.f32.xlu0 %v366
        %v368 = vpop.xlane.xlu0 %367
        %v369 = vrcp.pop 32.0
        %v370 = vmul.f32 %v368, %v369
        %v371 = vsub.f32 %v362, %v370
        %v372 = vmul.f32 %v371, %v371
        %v373 = vsel %vm365, %v372, 0.0
        %374 = vadd.xlane.f32.xlu0 %v373
        %v375 = vpop.xlane.xlu0 %374
        %v376 = vmul.f32 %v375, %v369
        %v377 = vadd.f32 %v376, 1e-12
        %v378 = vrsqrt.pop %v377
        %v379 = vmul.f32 %v371, %v378
        %v380 = vlaneseq
        %v381 = vshrl.u32 %v380, 7
        %v382 = vsub.s32 0, %v381
        %v383 = vrot.slane %v363, %v382
        %v384 = vmul.f32 %v379, %v383
        %v385 = vlaneseq
        %v386 = vshrl.u32 %v385, 7
        %v387 = vsub.s32 0, %v386
        %v388 = vrot.slane %v364, %v387
        %v389 = vadd.f32 %v384, %v388
        %v390 = vpack.c.bf16 %v389, %v389
        %v391 = vld [vmem:[%s4] sm:$0xf]
        %v392 = vld [vmem:[%s4 + $0x4] sm:$0xf]
        %v393 = vld [vmem:[%s4 + $0x8] sm:$0xf]
        %v394 = vld [vmem:[%s4 + $0xc] sm:$0xf]
        %v395 = vld [vmem:[%s3 + $0x2] sm:$0x1]
        %v396 = vlaneseq
        %v397 = vshrl.u32 %v396, 7
        %v398 = vsub.s32 0, %v397
        %v399 = vrot.slane %v395, %v398
        %v404 = vunpack.c.l.b16 %v391
        %v405 = vunpack.c.l.b16 %v392
        %v406 = vunpack.c.l.b16 %v393
        %v407 = vunpack.c.l.b16 %v394
        %v408 = vpack.c.b16 %v405, %v404
        %v409 = vpack.c.b16 %v407, %v406
        %v413 = vsel %vm365, %v390, 0
        %415 = vmatprep.subr.bf16.mxu0 0
        %416 = vmatpush1.bf16.msra.mxu0 %v408
        %417 = vmatprep.subr.bf16.mxu0 0
        %418 = vmatpush1.bf16.msra.mxu0 %v409
        %419 = vmatprep.subr.bf16.mxu0 0
        %420 = vmatpush1.bf16.msra.mxu0 0
        %421 = vmatprep.subr.bf16.mxu0 0
        %422 = vmatpush1.bf16.msra.mxu0 0
        %423 = vmatprep.subr.bf16.mxu0 0
        %424 = vmatpush1.bf16.msra.mxu0 0
        %425 = vmatprep.subr.bf16.mxu0 0
        %426 = vmatpush1.bf16.msra.mxu0 0
        %427 = vmatprep.subr.bf16.mxu0 0
        %428 = vmatpush1.bf16.msra.mxu0 0
        %429 = vmatprep.subr.bf16.mxu0 0
        %430 = vmatpush1.bf16.msra.mxu0 0
        %431 = vmatprep.subr.bf16.mxu0 0
        %432 = vmatpush1.bf16.msra.mxu0 0
        %433 = vmatprep.subr.bf16.mxu0 0
        %434 = vmatpush1.bf16.msra.mxu0 0
        %435 = vmatprep.subr.bf16.mxu0 0
        %436 = vmatpush1.bf16.msra.mxu0 0
        %437 = vmatprep.subr.bf16.mxu0 0
        %438 = vmatpush1.bf16.msra.mxu0 0
        %439 = vmatprep.subr.bf16.mxu0 0
        %440 = vmatpush1.bf16.msra.mxu0 0
        %441 = vmatprep.subr.bf16.mxu0 0
        %442 = vmatpush1.bf16.msra.mxu0 0
        %443 = vmatprep.subr.bf16.mxu0 0
        %444 = vmatpush1.bf16.msra.mxu0 0
        %445 = vmatprep.subr.bf16.mxu0 0
        %446 = vmatpush1.bf16.msra.mxu0 0
        %447 = vmatprep.mubr.bf16.mxu0 0
        %448 = vmatmul.mubr.bf16.gmra.mrb[0].mxu0 %v413
        %v449 = vpop.f32.mrb[0].mxu0
        %v450 = vadd.f32 %v399, %v449
        %v451 = vpop.f32.mrb[0].mxu0
        %v452 = vpop.f32.mrb[0].mxu0
        %v453 = vpop.f32.mrb[0].mxu0
        %454 = vdwg.mxu0
        %v455 = vmul.f32 %v450, 0.35355338
        %v456 = vpack.c.bf16 %v455, %v455
        %v457 = vpack.c.bf16 %v450, %v450
        %v458 = vld [vmem:[%s360] sm:$0x1]
        %v459 = vcvt.s32.f32 %v458
        %v460 = vsub.f32 1.0, %v459
        %v461 = vmul.f32 %v460, -1e+09
        %463 = vrot.lane.b32.xlu0 %v457, 96
        %v464 = vpop.permute.xlu0 %463
        %vm465 = vcmask 64512
        %v467 = vsel %vm465, %v456, 0
        %v470 = vsel %vm465, %v464, 0
        %472 = vmatprep.subr.bf16.mxu0 0
        %473 = vmatpush1.bf16.xpose.msra.mxu0 %v470
        %474 = vmatprep.subr.bf16.mxu0 0
        %475 = vmatpush1.bf16.xpose.msra.mxu0 0
        %476 = vmatprep.subr.bf16.mxu0 0
        %477 = vmatpush1.bf16.xpose.msra.mxu0 0
        %478 = vmatprep.subr.bf16.mxu0 0
        %479 = vmatpush1.bf16.xpose.msra.mxu0 0
        %480 = vmatprep.subr.bf16.mxu0 0
        %481 = vmatpush1.bf16.xpose.msra.mxu0 0
        %482 = vmatprep.subr.bf16.mxu0 0
        %483 = vmatpush1.bf16.xpose.msra.mxu0 0
        %484 = vmatprep.subr.bf16.mxu0 0
        %485 = vmatpush1.bf16.xpose.msra.mxu0 0
        %486 = vmatprep.subr.bf16.mxu0 0
        %487 = vmatpush1.bf16.xpose.msra.mxu0 0
        %488 = vmatprep.subr.bf16.mxu0 0
        %489 = vmatpush1.bf16.xpose.msra.mxu0 0
        %490 = vmatprep.subr.bf16.mxu0 0
        %491 = vmatpush1.bf16.xpose.msra.mxu0 0
        %492 = vmatprep.subr.bf16.mxu0 0
        %493 = vmatpush1.bf16.xpose.msra.mxu0 0
        %494 = vmatprep.subr.bf16.mxu0 0
        %495 = vmatpush1.bf16.xpose.msra.mxu0 0
        %496 = vmatprep.subr.bf16.mxu0 0
        %497 = vmatpush1.bf16.xpose.msra.mxu0 0
        %498 = vmatprep.subr.bf16.mxu0 0
        %499 = vmatpush1.bf16.xpose.msra.mxu0 0
        %500 = vmatprep.subr.bf16.mxu0 0
        %501 = vmatpush1.bf16.xpose.msra.mxu0 0
        %502 = vmatprep.subr.bf16.mxu0 0
        %503 = vmatpush1.bf16.xpose.msra.mxu0 0
        %504 = vmatprep.mubr.bf16.mxu0 0
        %505 = vmatmul.mubr.bf16.gmra.mrb[0].mxu0 %v467
        %v506 = vpop.f32.mrb[0].mxu0
        %v507 = vadd.f32 0.0, %v506
        %v508 = vpop.f32.mrb[0].mxu0
        %v509 = vpop.f32.mrb[0].mxu0
        %v510 = vpop.f32.mrb[0].mxu0
        %511 = vdwg.mxu0
        %513 = vrot.lane.b32.xlu0 %v456, 120
        %v514 = vpop.permute.xlu0 %513
        %515 = vrot.lane.b32.xlu0 %v457, 88
        %v516 = vpop.permute.xlu0 %515
        %v518 = vsel %vm465, %v514, 0
        %v521 = vsel %vm465, %v516, 0
        %523 = vmatprep.subr.bf16.mxu0 0
        %524 = vmatpush1.bf16.xpose.msra.mxu0 %v521
        %525 = vmatprep.subr.bf16.mxu0 0
        %526 = vmatpush1.bf16.xpose.msra.mxu0 0
        %527 = vmatprep.subr.bf16.mxu0 0
        %528 = vmatpush1.bf16.xpose.msra.mxu0 0
        %529 = vmatprep.subr.bf16.mxu0 0
        %530 = vmatpush1.bf16.xpose.msra.mxu0 0
        %531 = vmatprep.subr.bf16.mxu0 0
        %532 = vmatpush1.bf16.xpose.msra.mxu0 0
        %533 = vmatprep.subr.bf16.mxu0 0
        %534 = vmatpush1.bf16.xpose.msra.mxu0 0
        %535 = vmatprep.subr.bf16.mxu0 0
        %536 = vmatpush1.bf16.xpose.msra.mxu0 0
        %537 = vmatprep.subr.bf16.mxu0 0
        %538 = vmatpush1.bf16.xpose.msra.mxu0 0
        %539 = vmatprep.subr.bf16.mxu0 0
        %540 = vmatpush1.bf16.xpose.msra.mxu0 0
        %541 = vmatprep.subr.bf16.mxu0 0
        %542 = vmatpush1.bf16.xpose.msra.mxu0 0
        %543 = vmatprep.subr.bf16.mxu0 0
        %544 = vmatpush1.bf16.xpose.msra.mxu0 0
        %545 = vmatprep.subr.bf16.mxu0 0
        %546 = vmatpush1.bf16.xpose.msra.mxu0 0
        %547 = vmatprep.subr.bf16.mxu0 0
        %548 = vmatpush1.bf16.xpose.msra.mxu0 0
        %549 = vmatprep.subr.bf16.mxu0 0
        %550 = vmatpush1.bf16.xpose.msra.mxu0 0
        %551 = vmatprep.subr.bf16.mxu0 0
        %552 = vmatpush1.bf16.xpose.msra.mxu0 0
        %553 = vmatprep.subr.bf16.mxu0 0
        %554 = vmatpush1.bf16.xpose.msra.mxu0 0
        %555 = vmatprep.mubr.bf16.mxu0 0
        %556 = vmatmul.mubr.bf16.gmra.mrb[0].mxu0 %v518
        %v557 = vpop.f32.mrb[0].mxu0
        %v558 = vadd.f32 0.0, %v557
        %v559 = vpop.f32.mrb[0].mxu0
        %v560 = vpop.f32.mrb[0].mxu0
        %v561 = vpop.f32.mrb[0].mxu0
        %562 = vdwg.mxu0
        %563 = vrot.lane.b32.xlu0 %v456, 112
        %v564 = vpop.permute.xlu0 %563
        %565 = vrot.lane.b32.xlu0 %v457, 80
        %v566 = vpop.permute.xlu0 %565
        %v568 = vsel %vm465, %v564, 0
        %v571 = vsel %vm465, %v566, 0
        %573 = vmatprep.subr.bf16.mxu0 0
        %574 = vmatpush1.bf16.xpose.msra.mxu0 %v571
        %575 = vmatprep.subr.bf16.mxu0 0
        %576 = vmatpush1.bf16.xpose.msra.mxu0 0
        %577 = vmatprep.subr.bf16.mxu0 0
        %578 = vmatpush1.bf16.xpose.msra.mxu0 0
        %579 = vmatprep.subr.bf16.mxu0 0
        %580 = vmatpush1.bf16.xpose.msra.mxu0 0
        %581 = vmatprep.subr.bf16.mxu0 0
        %582 = vmatpush1.bf16.xpose.msra.mxu0 0
        %583 = vmatprep.subr.bf16.mxu0 0
        %584 = vmatpush1.bf16.xpose.msra.mxu0 0
        %585 = vmatprep.subr.bf16.mxu0 0
        %586 = vmatpush1.bf16.xpose.msra.mxu0 0
        %587 = vmatprep.subr.bf16.mxu0 0
        %588 = vmatpush1.bf16.xpose.msra.mxu0 0
        %589 = vmatprep.subr.bf16.mxu0 0
        %590 = vmatpush1.bf16.xpose.msra.mxu0 0
        %591 = vmatprep.subr.bf16.mxu0 0
        %592 = vmatpush1.bf16.xpose.msra.mxu0 0
        %593 = vmatprep.subr.bf16.mxu0 0
        %594 = vmatpush1.bf16.xpose.msra.mxu0 0
        %595 = vmatprep.subr.bf16.mxu0 0
        %596 = vmatpush1.bf16.xpose.msra.mxu0 0
        %597 = vmatprep.subr.bf16.mxu0 0
        %598 = vmatpush1.bf16.xpose.msra.mxu0 0
        %599 = vmatprep.subr.bf16.mxu0 0
        %600 = vmatpush1.bf16.xpose.msra.mxu0 0
        %601 = vmatprep.subr.bf16.mxu0 0
        %602 = vmatpush1.bf16.xpose.msra.mxu0 0
        %603 = vmatprep.subr.bf16.mxu0 0
        %604 = vmatpush1.bf16.xpose.msra.mxu0 0
        %605 = vmatprep.mubr.bf16.mxu0 0
        %606 = vmatmul.mubr.bf16.gmra.mrb[0].mxu0 %v568
        %v607 = vpop.f32.mrb[0].mxu0
        %v608 = vadd.f32 0.0, %v607
        %v609 = vpop.f32.mrb[0].mxu0
        %v610 = vpop.f32.mrb[0].mxu0
        %v611 = vpop.f32.mrb[0].mxu0
        %612 = vdwg.mxu0
        %613 = vrot.lane.b32.xlu0 %v456, 104
        %v614 = vpop.permute.xlu0 %613
        %615 = vrot.lane.b32.xlu0 %v457, 72
        %v616 = vpop.permute.xlu0 %615
        %v618 = vsel %vm465, %v614, 0
        %v621 = vsel %vm465, %v616, 0
        %623 = vmatprep.subr.bf16.mxu0 0
        %624 = vmatpush1.bf16.xpose.msra.mxu0 %v621
        %625 = vmatprep.subr.bf16.mxu0 0
        %626 = vmatpush1.bf16.xpose.msra.mxu0 0
        %627 = vmatprep.subr.bf16.mxu0 0
        %628 = vmatpush1.bf16.xpose.msra.mxu0 0
        %629 = vmatprep.subr.bf16.mxu0 0
        %630 = vmatpush1.bf16.xpose.msra.mxu0 0
        %631 = vmatprep.subr.bf16.mxu0 0
        %632 = vmatpush1.bf16.xpose.msra.mxu0 0
        %633 = vmatprep.subr.bf16.mxu0 0
        %634 = vmatpush1.bf16.xpose.msra.mxu0 0
        %635 = vmatprep.subr.bf16.mxu0 0
        %636 = vmatpush1.bf16.xpose.msra.mxu0 0
        %637 = vmatprep.subr.bf16.mxu0 0
        %638 = vmatpush1.bf16.xpose.msra.mxu0 0
        %639 = vmatprep.subr.bf16.mxu0 0
        %640 = vmatpush1.bf16.xpose.msra.mxu0 0
        %641 = vmatprep.subr.bf16.mxu0 0
        %642 = vmatpush1.bf16.xpose.msra.mxu0 0
        %643 = vmatprep.subr.bf16.mxu0 0
        %644 = vmatpush1.bf16.xpose.msra.mxu0 0
        %645 = vmatprep.subr.bf16.mxu0 0
        %646 = vmatpush1.bf16.xpose.msra.mxu0 0
        %647 = vmatprep.subr.bf16.mxu0 0
        %648 = vmatpush1.bf16.xpose.msra.mxu0 0
        %649 = vmatprep.subr.bf16.mxu0 0
        %650 = vmatpush1.bf16.xpose.msra.mxu0 0
        %651 = vmatprep.subr.bf16.mxu0 0
        %652 = vmatpush1.bf16.xpose.msra.mxu0 0
        %653 = vmatprep.subr.bf16.mxu0 0
        %654 = vmatpush1.bf16.xpose.msra.mxu0 0
        %655 = vmatprep.mubr.bf16.mxu0 0
        %656 = vmatmul.mubr.bf16.gmra.mrb[0].mxu0 %v618
        %v657 = vpop.f32.mrb[0].mxu0
        %v658 = vadd.f32 0.0, %v657
        %v659 = vpop.f32.mrb[0].mxu0
        %v660 = vpop.f32.mrb[0].mxu0
        %v661 = vpop.f32.mrb[0].mxu0
        %662 = vdwg.mxu0
        %v664 = vlaneseq
        %v665 = vshrl.u32 %v664, 7
        %v666 = vsub.s32 0, %v665
        %v667 = vrot.slane %v461, %v666
        %v669 = vadd.f32 %v507, %v667
        %v670 = vadd.f32 %v558, %v667
        %v671 = vadd.f32 %v608, %v667
        %v672 = vadd.f32 %v658, %v667
        %v673 = vsel %vm465, %v669, -inf
        %674 = vmax.xlane.f32.xlu0 %v673
        %v675 = vpop.xlane.xlu0 %674
        %v676 = vsel %vm465, %v670, -inf
        %677 = vmax.xlane.f32.xlu0 %v676
        %v678 = vpop.xlane.xlu0 %677
        %v679 = vsel %vm465, %v671, -inf
        %680 = vmax.xlane.f32.xlu0 %v679
        %v681 = vpop.xlane.xlu0 %680
        %v682 = vsel %vm465, %v672, -inf
        %683 = vmax.xlane.f32.xlu0 %v682
        %v684 = vpop.xlane.xlu0 %683
        %v685 = vsub.f32 %v669, %v675
        %v686 = vsub.f32 %v670, %v678
        %v687 = vsub.f32 %v671, %v681
        %v688 = vsub.f32 %v672, %v684
        %v689 = vmul.f32 %v685, 1.442695
        %v690 = vpow.pop %v689
        %v691 = vmul.f32 %v686, 1.442695
        %v692 = vpow.pop %v691
        %v693 = vmul.f32 %v687, 1.442695
        %v694 = vpow.pop %v693
        %v695 = vmul.f32 %v688, 1.442695
        %v696 = vpow.pop %v695
        %v697 = vsel %vm465, %v690, 0.0
        %698 = vadd.xlane.f32.xlu0 %v697
        %v699 = vpop.xlane.xlu0 %698
        %v700 = vsel %vm465, %v692, 0.0
        %701 = vadd.xlane.f32.xlu0 %v700
        %v702 = vpop.xlane.xlu0 %701
        %v703 = vsel %vm465, %v694, 0.0
        %704 = vadd.xlane.f32.xlu0 %v703
        %v705 = vpop.xlane.xlu0 %704
        %v706 = vsel %vm465, %v696, 0.0
        %707 = vadd.xlane.f32.xlu0 %v706
        %v708 = vpop.xlane.xlu0 %707
        %v709 = vrcp.pop %v699
        %v710 = vrcp.pop %v702
        %v711 = vrcp.pop %v705
        %v712 = vrcp.pop %v708
        %v713 = vmul.f32 %v690, %v709
        %v714 = vmul.f32 %v692, %v710
        %v715 = vmul.f32 %v694, %v711
        %v716 = vmul.f32 %v696, %v712
        %v717 = vpack.c.bf16 %v713, %v713
        %v718 = vpack.c.bf16 %v714, %v714
        %v719 = vpack.c.bf16 %v715, %v715
        %v720 = vpack.c.bf16 %v716, %v716
        %v721 = vld [vmem:[%s3 + $0x3] sm:$0x1]
        %722 = vrot.lane.b32.xlu0 %v457, 64
        %v723 = vpop.permute.xlu0 %722
        %v725 = vsel %vm465, %v717, 0
        %vm727 = vcmask 1043456
        %v729 = vsel %vm727, %v723, 0
        %731 = vmatprep.subr.bf16.mxu0 0
        %732 = vmatpush1.bf16.msra.mxu0 %v729
        %733 = vmatprep.subr.bf16.mxu0 0
        %734 = vmatpush1.bf16.msra.mxu0 0
        %735 = vmatprep.subr.bf16.mxu0 0
        %736 = vmatpush1.bf16.msra.mxu0 0
        %737 = vmatprep.subr.bf16.mxu0 0
        %738 = vmatpush1.bf16.msra.mxu0 0
        %739 = vmatprep.subr.bf16.mxu0 0
        %740 = vmatpush1.bf16.msra.mxu0 0
        %741 = vmatprep.subr.bf16.mxu0 0
        %742 = vmatpush1.bf16.msra.mxu0 0
        %743 = vmatprep.subr.bf16.mxu0 0
        %744 = vmatpush1.bf16.msra.mxu0 0
        %745 = vmatprep.subr.bf16.mxu0 0
        %746 = vmatpush1.bf16.msra.mxu0 0
        %747 = vmatprep.subr.bf16.mxu0 0
        %748 = vmatpush1.bf16.msra.mxu0 0
        %749 = vmatprep.subr.bf16.mxu0 0
        %750 = vmatpush1.bf16.msra.mxu0 0
        %751 = vmatprep.subr.bf16.mxu0 0
        %752 = vmatpush1.bf16.msra.mxu0 0
        %753 = vmatprep.subr.bf16.mxu0 0
        %754 = vmatpush1.bf16.msra.mxu0 0
        %755 = vmatprep.subr.bf16.mxu0 0
        %756 = vmatpush1.bf16.msra.mxu0 0
        %757 = vmatprep.subr.bf16.mxu0 0
        %758 = vmatpush1.bf16.msra.mxu0 0
        %759 = vmatprep.subr.bf16.mxu0 0
        %760 = vmatpush1.bf16.msra.mxu0 0
        %761 = vmatprep.subr.bf16.mxu0 0
        %762 = vmatpush1.bf16.msra.mxu0 0
        %763 = vmatprep.mubr.bf16.mxu0 0
        %764 = vmatmul.mubr.bf16.gmra.mrb[0].mxu0 %v725
        %v765 = vpop.f32.mrb[0].mxu0
        %v766 = vadd.f32 0.0, %v765
        %v767 = vpop.f32.mrb[0].mxu0
        %v768 = vpop.f32.mrb[0].mxu0
        %v769 = vpop.f32.mrb[0].mxu0
        %770 = vdwg.mxu0
        %v771 = vpack.c.bf16 %v766, %v766
        %v772 = vld [vmem:[#allocation4] sm:$0xf]
        %v774 = vsel %vm465, %v771, 0
        %v777 = vsel %vm727, %v772, 0
        %779 = vmatprep.subr.bf16.mxu0 0
        %780 = vmatpush1.bf16.msra.mxu0 %v777
        %781 = vmatprep.subr.bf16.mxu0 0
        %782 = vmatpush1.bf16.msra.mxu0 0
        %783 = vmatprep.subr.bf16.mxu0 0
        %784 = vmatpush1.bf16.msra.mxu0 0
        %785 = vmatprep.subr.bf16.mxu0 0
        %786 = vmatpush1.bf16.msra.mxu0 0
        %787 = vmatprep.subr.bf16.mxu0 0
        %788 = vmatpush1.bf16.msra.mxu0 0
        %789 = vmatprep.subr.bf16.mxu0 0
        %790 = vmatpush1.bf16.msra.mxu0 0
        %791 = vmatprep.subr.bf16.mxu0 0
        %792 = vmatpush1.bf16.msra.mxu0 0
        %793 = vmatprep.subr.bf16.mxu0 0
        %794 = vmatpush1.bf16.msra.mxu0 0
        %795 = vmatprep.subr.bf16.mxu0 0
        %796 = vmatpush1.bf16.msra.mxu0 0
        %797 = vmatprep.subr.bf16.mxu0 0
        %798 = vmatpush1.bf16.msra.mxu0 0
        %799 = vmatprep.subr.bf16.mxu0 0
        %800 = vmatpush1.bf16.msra.mxu0 0
        %801 = vmatprep.subr.bf16.mxu0 0
        %802 = vmatpush1.bf16.msra.mxu0 0
        %803 = vmatprep.subr.bf16.mxu0 0
        %804 = vmatpush1.bf16.msra.mxu0 0
        %805 = vmatprep.subr.bf16.mxu0 0
        %806 = vmatpush1.bf16.msra.mxu0 0
        %807 = vmatprep.subr.bf16.mxu0 0
        %808 = vmatpush1.bf16.msra.mxu0 0
        %809 = vmatprep.subr.bf16.mxu0 0
        %810 = vmatpush1.bf16.msra.mxu0 0
        %811 = vmatprep.mubr.bf16.mxu0 0
        %812 = vmatmul.mubr.bf16.gmra.mrb[0].mxu0 %v774
        %v813 = vpop.f32.mrb[0].mxu0
        %v814 = vadd.f32 0.0, %v813
        %v815 = vpop.f32.mrb[0].mxu0
        %v816 = vpop.f32.mrb[0].mxu0
        %v817 = vpop.f32.mrb[0].mxu0
        %818 = vdwg.mxu0
        %v819 = vlaneseq
        %v820 = vshrl.u32 %v819, 7
        %v821 = vsub.s32 0, %v820
        %v822 = vrot.slane %v721, %v821
        %v823 = vadd.f32 %v822, %v814
        %824 = vrot.lane.b32.xlu0 %v457, 56
        %v825 = vpop.permute.xlu0 %824
        %v827 = vsel %vm465, %v718, 0
        %v830 = vsel %vm727, %v825, 0
        %832 = vmatprep.subr.bf16.mxu0 0
        %833 = vmatpush1.bf16.msra.mxu0 %v830
        %834 = vmatprep.subr.bf16.mxu0 0
        %835 = vmatpush1.bf16.msra.mxu0 0
        %836 = vmatprep.subr.bf16.mxu0 0
        %837 = vmatpush1.bf16.msra.mxu0 0
        %838 = vmatprep.subr.bf16.mxu0 0
        %839 = vmatpush1.bf16.msra.mxu0 0
        %840 = vmatprep.subr.bf16.mxu0 0
        %841 = vmatpush1.bf16.msra.mxu0 0
        %842 = vmatprep.subr.bf16.mxu0 0
        %843 = vmatpush1.bf16.msra.mxu0 0
        %844 = vmatprep.subr.bf16.mxu0 0
        %845 = vmatpush1.bf16.msra.mxu0 0
        %846 = vmatprep.subr.bf16.mxu0 0
        %847 = vmatpush1.bf16.msra.mxu0 0
        %848 = vmatprep.subr.bf16.mxu0 0
        %849 = vmatpush1.bf16.msra.mxu0 0
        %850 = vmatprep.subr.bf16.mxu0 0
        %851 = vmatpush1.bf16.msra.mxu0 0
        %852 = vmatprep.subr.bf16.mxu0 0
        %853 = vmatpush1.bf16.msra.mxu0 0
        %854 = vmatprep.subr.bf16.mxu0 0
        %855 = vmatpush1.bf16.msra.mxu0 0
        %856 = vmatprep.subr.bf16.mxu0 0
        %857 = vmatpush1.bf16.msra.mxu0 0
        %858 = vmatprep.subr.bf16.mxu0 0
        %859 = vmatpush1.bf16.msra.mxu0 0
        %860 = vmatprep.subr.bf16.mxu0 0
        %861 = vmatpush1.bf16.msra.mxu0 0
        %862 = vmatprep.subr.bf16.mxu0 0
        %863 = vmatpush1.bf16.msra.mxu0 0
        %864 = vmatprep.mubr.bf16.mxu0 0
        %865 = vmatmul.mubr.bf16.gmra.mrb[0].mxu0 %v827
        %v866 = vpop.f32.mrb[0].mxu0
        %v867 = vadd.f32 0.0, %v866
        %v868 = vpop.f32.mrb[0].mxu0
        %v869 = vpop.f32.mrb[0].mxu0
        %v870 = vpop.f32.mrb[0].mxu0
        %871 = vdwg.mxu0
        %v872 = vpack.c.bf16 %v867, %v867
        %s873 = scalar_lea.vmem [#allocation4], 4
        %v874 = vld [vmem:[%s873] sm:$0xf]
        %v876 = vsel %vm465, %v872, 0
        %v879 = vsel %vm727, %v874, 0
        %881 = vmatprep.subr.bf16.mxu0 0
        %882 = vmatpush1.bf16.msra.mxu0 %v879
        %883 = vmatprep.subr.bf16.mxu0 0
        %884 = vmatpush1.bf16.msra.mxu0 0
        %885 = vmatprep.subr.bf16.mxu0 0
        %886 = vmatpush1.bf16.msra.mxu0 0
        %887 = vmatprep.subr.bf16.mxu0 0
        %888 = vmatpush1.bf16.msra.mxu0 0
        %889 = vmatprep.subr.bf16.mxu0 0
        %890 = vmatpush1.bf16.msra.mxu0 0
        %891 = vmatprep.subr.bf16.mxu0 0
        %892 = vmatpush1.bf16.msra.mxu0 0
        %893 = vmatprep.subr.bf16.mxu0 0
        %894 = vmatpush1.bf16.msra.mxu0 0
        %895 = vmatprep.subr.bf16.mxu0 0
        %896 = vmatpush1.bf16.msra.mxu0 0
        %897 = vmatprep.subr.bf16.mxu0 0
        %898 = vmatpush1.bf16.msra.mxu0 0
        %899 = vmatprep.subr.bf16.mxu0 0
        %900 = vmatpush1.bf16.msra.mxu0 0
        %901 = vmatprep.subr.bf16.mxu0 0
        %902 = vmatpush1.bf16.msra.mxu0 0
        %903 = vmatprep.subr.bf16.mxu0 0
        %904 = vmatpush1.bf16.msra.mxu0 0
        %905 = vmatprep.subr.bf16.mxu0 0
        %906 = vmatpush1.bf16.msra.mxu0 0
        %907 = vmatprep.subr.bf16.mxu0 0
        %908 = vmatpush1.bf16.msra.mxu0 0
        %909 = vmatprep.subr.bf16.mxu0 0
        %910 = vmatpush1.bf16.msra.mxu0 0
        %911 = vmatprep.subr.bf16.mxu0 0
        %912 = vmatpush1.bf16.msra.mxu0 0
        %913 = vmatprep.mubr.bf16.mxu0 0
        %914 = vmatmul.mubr.bf16.gmra.mrb[0].mxu0 %v876
        %v915 = vpop.f32.mrb[0].mxu0
        %v916 = vadd.f32 0.0, %v915
        %v917 = vpop.f32.mrb[0].mxu0
        %v918 = vpop.f32.mrb[0].mxu0
        %v919 = vpop.f32.mrb[0].mxu0
        %920 = vdwg.mxu0
        %v921 = vadd.f32 %v823, %v916
        %922 = vrot.lane.b32.xlu0 %v457, 48
        %v923 = vpop.permute.xlu0 %922
        %v925 = vsel %vm465, %v719, 0
        %v928 = vsel %vm727, %v923, 0
        %930 = vmatprep.subr.bf16.mxu0 0
        %931 = vmatpush1.bf16.msra.mxu0 %v928
        %932 = vmatprep.subr.bf16.mxu0 0
        %933 = vmatpush1.bf16.msra.mxu0 0
        %934 = vmatprep.subr.bf16.mxu0 0
        %935 = vmatpush1.bf16.msra.mxu0 0
        %936 = vmatprep.subr.bf16.mxu0 0
        %937 = vmatpush1.bf16.msra.mxu0 0
        %938 = vmatprep.subr.bf16.mxu0 0
        %939 = vmatpush1.bf16.msra.mxu0 0
        %940 = vmatprep.subr.bf16.mxu0 0
        %941 = vmatpush1.bf16.msra.mxu0 0
        %942 = vmatprep.subr.bf16.mxu0 0
        %943 = vmatpush1.bf16.msra.mxu0 0
        %944 = vmatprep.subr.bf16.mxu0 0
        %945 = vmatpush1.bf16.msra.mxu0 0
        %946 = vmatprep.subr.bf16.mxu0 0
        %947 = vmatpush1.bf16.msra.mxu0 0
        %948 = vmatprep.subr.bf16.mxu0 0
        %949 = vmatpush1.bf16.msra.mxu0 0
        %950 = vmatprep.subr.bf16.mxu0 0
        %951 = vmatpush1.bf16.msra.mxu0 0
        %952 = vmatprep.subr.bf16.mxu0 0
        %953 = vmatpush1.bf16.msra.mxu0 0
        %954 = vmatprep.subr.bf16.mxu0 0
        %955 = vmatpush1.bf16.msra.mxu0 0
        %956 = vmatprep.subr.bf16.mxu0 0
        %957 = vmatpush1.bf16.msra.mxu0 0
        %958 = vmatprep.subr.bf16.mxu0 0
        %959 = vmatpush1.bf16.msra.mxu0 0
        %960 = vmatprep.subr.bf16.mxu0 0
        %961 = vmatpush1.bf16.msra.mxu0 0
        %962 = vmatprep.mubr.bf16.mxu0 0
        %963 = vmatmul.mubr.bf16.gmra.mrb[0].mxu0 %v925
        %v964 = vpop.f32.mrb[0].mxu0
        %v965 = vadd.f32 0.0, %v964
        %v966 = vpop.f32.mrb[0].mxu0
        %v967 = vpop.f32.mrb[0].mxu0
        %v968 = vpop.f32.mrb[0].mxu0
        %969 = vdwg.mxu0
        %v970 = vpack.c.bf16 %v965, %v965
        %s971 = scalar_lea.vmem [#allocation4], 8
        %v972 = vld [vmem:[%s971] sm:$0xf]
        %v974 = vsel %vm465, %v970, 0
        %v977 = vsel %vm727, %v972, 0
        %979 = vmatprep.subr.bf16.mxu0 0
        %980 = vmatpush1.bf16.msra.mxu0 %v977
        %981 = vmatprep.subr.bf16.mxu0 0
        %982 = vmatpush1.bf16.msra.mxu0 0
        %983 = vmatprep.subr.bf16.mxu0 0
        %984 = vmatpush1.bf16.msra.mxu0 0
        %985 = vmatprep.subr.bf16.mxu0 0
        %986 = vmatpush1.bf16.msra.mxu0 0
        %987 = vmatprep.subr.bf16.mxu0 0
        %988 = vmatpush1.bf16.msra.mxu0 0
        %989 = vmatprep.subr.bf16.mxu0 0
        %990 = vmatpush1.bf16.msra.mxu0 0
        %991 = vmatprep.subr.bf16.mxu0 0
        %992 = vmatpush1.bf16.msra.mxu0 0
        %993 = vmatprep.subr.bf16.mxu0 0
        %994 = vmatpush1.bf16.msra.mxu0 0
        %995 = vmatprep.subr.bf16.mxu0 0
        %996 = vmatpush1.bf16.msra.mxu0 0
        %997 = vmatprep.subr.bf16.mxu0 0
        %998 = vmatpush1.bf16.msra.mxu0 0
        %999 = vmatprep.subr.bf16.mxu0 0
        %1000 = vmatpush1.bf16.msra.mxu0 0
        %1001 = vmatprep.subr.bf16.mxu0 0
        %1002 = vmatpush1.bf16.msra.mxu0 0
        %1003 = vmatprep.subr.bf16.mxu0 0
        %1004 = vmatpush1.bf16.msra.mxu0 0
        %1005 = vmatprep.subr.bf16.mxu0 0
        %1006 = vmatpush1.bf16.msra.mxu0 0
        %1007 = vmatprep.subr.bf16.mxu0 0
        %1008 = vmatpush1.bf16.msra.mxu0 0
        %1009 = vmatprep.subr.bf16.mxu0 0
        %1010 = vmatpush1.bf16.msra.mxu0 0
        %1011 = vmatprep.mubr.bf16.mxu0 0
        %1012 = vmatmul.mubr.bf16.gmra.mrb[0].mxu0 %v974
        %v1013 = vpop.f32.mrb[0].mxu0
        %v1014 = vadd.f32 0.0, %v1013
        %v1015 = vpop.f32.mrb[0].mxu0
        %v1016 = vpop.f32.mrb[0].mxu0
        %v1017 = vpop.f32.mrb[0].mxu0
        %1018 = vdwg.mxu0
        %v1019 = vadd.f32 %v921, %v1014
        %1020 = vrot.lane.b32.xlu0 %v457, 40
        %v1021 = vpop.permute.xlu0 %1020
        %v1023 = vsel %vm465, %v720, 0
        %v1026 = vsel %vm727, %v1021, 0
        %1028 = vmatprep.subr.bf16.mxu0 0
        %1029 = vmatpush1.bf16.msra.mxu0 %v1026
        %1030 = vmatprep.subr.bf16.mxu0 0
        %1031 = vmatpush1.bf16.msra.mxu0 0
        %1032 = vmatprep.subr.bf16.mxu0 0
        %1033 = vmatpush1.bf16.msra.mxu0 0
        %1034 = vmatprep.subr.bf16.mxu0 0
        %1035 = vmatpush1.bf16.msra.mxu0 0
        %1036 = vmatprep.subr.bf16.mxu0 0
        %1037 = vmatpush1.bf16.msra.mxu0 0
        %1038 = vmatprep.subr.bf16.mxu0 0
        %1039 = vmatpush1.bf16.msra.mxu0 0
        %1040 = vmatprep.subr.bf16.mxu0 0
        %1041 = vmatpush1.bf16.msra.mxu0 0
        %1042 = vmatprep.subr.bf16.mxu0 0
        %1043 = vmatpush1.bf16.msra.mxu0 0
        %1044 = vmatprep.subr.bf16.mxu0 0
        %1045 = vmatpush1.bf16.msra.mxu0 0
        %1046 = vmatprep.subr.bf16.mxu0 0
        %1047 = vmatpush1.bf16.msra.mxu0 0
        %1048 = vmatprep.subr.bf16.mxu0 0
        %1049 = vmatpush1.bf16.msra.mxu0 0
        %1050 = vmatprep.subr.bf16.mxu0 0
        %1051 = vmatpush1.bf16.msra.mxu0 0
        %1052 = vmatprep.subr.bf16.mxu0 0
        %1053 = vmatpush1.bf16.msra.mxu0 0
        %1054 = vmatprep.subr.bf16.mxu0 0
        %1055 = vmatpush1.bf16.msra.mxu0 0
        %1056 = vmatprep.subr.bf16.mxu0 0
        %1057 = vmatpush1.bf16.msra.mxu0 0
        %1058 = vmatprep.subr.bf16.mxu0 0
        %1059 = vmatpush1.bf16.msra.mxu0 0
        %1060 = vmatprep.mubr.bf16.mxu0 0
        %1061 = vmatmul.mubr.bf16.gmra.mrb[0].mxu0 %v1023
        %v1062 = vpop.f32.mrb[0].mxu0
        %v1063 = vadd.f32 0.0, %v1062
        %v1064 = vpop.f32.mrb[0].mxu0
        %v1065 = vpop.f32.mrb[0].mxu0
        %v1066 = vpop.f32.mrb[0].mxu0
        %1067 = vdwg.mxu0
        %v1068 = vpack.c.bf16 %v1063, %v1063
        %s1069 = scalar_lea.vmem [#allocation4], 12
        %v1070 = vld [vmem:[%s1069] sm:$0xf]
        %v1072 = vsel %vm465, %v1068, 0
        %v1075 = vsel %vm727, %v1070, 0
        %1077 = vmatprep.subr.bf16.mxu0 0
        %1078 = vmatpush1.bf16.msra.mxu0 %v1075
        %1079 = vmatprep.subr.bf16.mxu0 0
        %1080 = vmatpush1.bf16.msra.mxu0 0
        %1081 = vmatprep.subr.bf16.mxu0 0
        %1082 = vmatpush1.bf16.msra.mxu0 0
        %1083 = vmatprep.subr.bf16.mxu0 0
        %1084 = vmatpush1.bf16.msra.mxu0 0
        %1085 = vmatprep.subr.bf16.mxu0 0
        %1086 = vmatpush1.bf16.msra.mxu0 0
        %1087 = vmatprep.subr.bf16.mxu0 0
        %1088 = vmatpush1.bf16.msra.mxu0 0
        %1089 = vmatprep.subr.bf16.mxu0 0
        %1090 = vmatpush1.bf16.msra.mxu0 0
        %1091 = vmatprep.subr.bf16.mxu0 0
        %1092 = vmatpush1.bf16.msra.mxu0 0
        %1093 = vmatprep.subr.bf16.mxu0 0
        %1094 = vmatpush1.bf16.msra.mxu0 0
        %1095 = vmatprep.subr.bf16.mxu0 0
        %1096 = vmatpush1.bf16.msra.mxu0 0
        %1097 = vmatprep.subr.bf16.mxu0 0
        %1098 = vmatpush1.bf16.msra.mxu0 0
        %1099 = vmatprep.subr.bf16.mxu0 0
        %1100 = vmatpush1.bf16.msra.mxu0 0
        %1101 = vmatprep.subr.bf16.mxu0 0
        %1102 = vmatpush1.bf16.msra.mxu0 0
        %1103 = vmatprep.subr.bf16.mxu0 0
        %1104 = vmatpush1.bf16.msra.mxu0 0
        %1105 = vmatprep.subr.bf16.mxu0 0
        %1106 = vmatpush1.bf16.msra.mxu0 0
        %1107 = vmatprep.subr.bf16.mxu0 0
        %1108 = vmatpush1.bf16.msra.mxu0 0
        %1109 = vmatprep.mubr.bf16.mxu0 0
        %1110 = vmatmul.mubr.bf16.gmra.mrb[0].mxu0 %v1072
        %v1111 = vpop.f32.mrb[0].mxu0
        %v1112 = vadd.f32 0.0, %v1111
        %v1113 = vpop.f32.mrb[0].mxu0
        %v1114 = vpop.f32.mrb[0].mxu0
        %v1115 = vpop.f32.mrb[0].mxu0
        %1116 = vdwg.mxu0
        %v1117 = vadd.f32 %v1019, %v1112
        %v1118 = vadd.f32 %v389, %v1117
        %v1119 = vld [vmem:[%s3 + $0x4] sm:$0x1]
        %v1120 = vld [vmem:[%s3 + $0x5] sm:$0x1]
        %v1121 = vsel %vm365, %v1118, 0.0
        %1122 = vadd.xlane.f32.xlu0 %v1121
        %v1123 = vpop.xlane.xlu0 %1122
        %v1124 = vmul.f32 %v1123, %v369
        %v1125 = vsub.f32 %v1118, %v1124
        %v1126 = vmul.f32 %v1125, %v1125
        %v1127 = vsel %vm365, %v1126, 0.0
        %1128 = vadd.xlane.f32.xlu0 %v1127
        %v1129 = vpop.xlane.xlu0 %1128
        %v1130 = vmul.f32 %v1129, %v369
        %v1131 = vadd.f32 %v1130, 1e-12
        %v1132 = vrsqrt.pop %v1131
        %v1133 = vmul.f32 %v1125, %v1132
        %v1134 = vlaneseq
        %v1135 = vshrl.u32 %v1134, 7
        %v1136 = vsub.s32 0, %v1135
        %v1137 = vrot.slane %v1119, %v1136
        %v1138 = vmul.f32 %v1133, %v1137
        %v1139 = vlaneseq
        %v1140 = vshrl.u32 %v1139, 7
        %v1141 = vsub.s32 0, %v1140
        %v1142 = vrot.slane %v1120, %v1141
        %v1143 = vadd.f32 %v1138, %v1142
        %v1144 = vpack.c.bf16 %v1143, %v1143
        %v1145 = vld [vmem:[#allocation7] sm:$0xf]
        %v1146 = vld [vmem:[#allocation7 + $0x4] sm:$0xf]
        %v1147 = vld [vmem:[#allocation7 + $0x8] sm:$0xf]
        %v1148 = vld [vmem:[#allocation7 + $0xc] sm:$0xf]
        %v1149 = vld [vmem:[%s3 + $0x6] sm:$0x1]
        %v1150 = vlaneseq
        %v1151 = vshrl.u32 %v1150, 7
        %v1152 = vsub.s32 0, %v1151
        %v1153 = vrot.slane %v1149, %v1152
        %v1158 = vunpack.c.l.b16 %v1145
        %v1159 = vunpack.c.l.b16 %v1146
        %v1160 = vunpack.c.l.b16 %v1147
        %v1161 = vunpack.c.l.b16 %v1148
        %v1162 = vpack.c.b16 %v1159, %v1158
        %v1163 = vpack.c.b16 %v1161, %v1160
        %v1167 = vsel %vm365, %v1144, 0
        %1169 = vmatprep.subr.bf16.mxu0 0
        %1170 = vmatpush1.bf16.msra.mxu0 %v1162
        %1171 = vmatprep.subr.bf16.mxu0 0
        %1172 = vmatpush1.bf16.msra.mxu0 %v1163
        %1173 = vmatprep.subr.bf16.mxu0 0
        %1174 = vmatpush1.bf16.msra.mxu0 0
        %1175 = vmatprep.subr.bf16.mxu0 0
        %1176 = vmatpush1.bf16.msra.mxu0 0
        %1177 = vmatprep.subr.bf16.mxu0 0
        %1178 = vmatpush1.bf16.msra.mxu0 0
        %1179 = vmatprep.subr.bf16.mxu0 0
        %1180 = vmatpush1.bf16.msra.mxu0 0
        %1181 = vmatprep.subr.bf16.mxu0 0
        %1182 = vmatpush1.bf16.msra.mxu0 0
        %1183 = vmatprep.subr.bf16.mxu0 0
        %1184 = vmatpush1.bf16.msra.mxu0 0
        %1185 = vmatprep.subr.bf16.mxu0 0
        %1186 = vmatpush1.bf16.msra.mxu0 0
        %1187 = vmatprep.subr.bf16.mxu0 0
        %1188 = vmatpush1.bf16.msra.mxu0 0
        %1189 = vmatprep.subr.bf16.mxu0 0
        %1190 = vmatpush1.bf16.msra.mxu0 0
        %1191 = vmatprep.subr.bf16.mxu0 0
        %1192 = vmatpush1.bf16.msra.mxu0 0
        %1193 = vmatprep.subr.bf16.mxu0 0
        %1194 = vmatpush1.bf16.msra.mxu0 0
        %1195 = vmatprep.subr.bf16.mxu0 0
        %1196 = vmatpush1.bf16.msra.mxu0 0
        %1197 = vmatprep.subr.bf16.mxu0 0
        %1198 = vmatpush1.bf16.msra.mxu0 0
        %1199 = vmatprep.subr.bf16.mxu0 0
        %1200 = vmatpush1.bf16.msra.mxu0 0
        %1201 = vmatprep.mubr.bf16.mxu0 0
        %1202 = vmatmul.mubr.bf16.gmra.mrb[0].mxu0 %v1167
        %v1203 = vpop.f32.mrb[0].mxu0
        %v1204 = vadd.f32 %v1153, %v1203
        %v1205 = vpop.f32.mrb[0].mxu0
        %v1206 = vpop.f32.mrb[0].mxu0
        %v1207 = vpop.f32.mrb[0].mxu0
        %1208 = vdwg.mxu0
        %v1209 = vmul.f32 %v1204, %v1204
        %v1210 = vmul.f32 %v1204, %v1209
        %v1211 = vmul.f32 %v1210, 0.044715
        %v1212 = vadd.f32 %v1204, %v1211
        %v1213 = vmul.f32 %v1212, 0.7978846
        %v1214 = vtanh.pop %v1213
        %v1215 = vadd.f32 %v1214, 1.0
        %v1216 = vmul.f32 %v1215, 0.5
        %v1217 = vmul.f32 %v1204, %v1216
        %v1218 = vpack.c.bf16 %v1217, %v1217
        %v1219 = vld [vmem:[%s7] sm:$0xf]
        %v1220 = vld [vmem:[%s7 + $0x4] sm:$0xf]
        %v1221 = vld [vmem:[%s7 + $0x8] sm:$0xf]
        %v1222 = vld [vmem:[%s7 + $0xc] sm:$0xf]
        %v1223 = vld [vmem:[%s7 + $0x10] sm:$0xf]
        %v1224 = vld [vmem:[%s7 + $0x14] sm:$0xf]
        %v1225 = vld [vmem:[%s7 + $0x18] sm:$0xf]
        %v1226 = vld [vmem:[%s7 + $0x1c] sm:$0xf]
        %v1227 = vld [vmem:[%s3 + $0x7] sm:$0x1]
        %v1228 = vlaneseq
        %v1229 = vshrl.u32 %v1228, 7
        %v1230 = vsub.s32 0, %v1229
        %v1231 = vrot.slane %v1227, %v1230
        %v1240 = vunpack.c.l.b16 %v1219
        %v1241 = vunpack.c.l.b16 %v1220
        %v1242 = vunpack.c.l.b16 %v1221
        %v1243 = vunpack.c.l.b16 %v1222
        %v1244 = vunpack.c.l.b16 %v1223
        %v1245 = vunpack.c.l.b16 %v1224
        %v1246 = vunpack.c.l.b16 %v1225
        %v1247 = vunpack.c.l.b16 %v1226
        %v1248 = vpack.c.b16 %v1241, %v1240
        %v1249 = vpack.c.b16 %v1243, %v1242
        %v1250 = vpack.c.b16 %v1245, %v1244
        %v1251 = vpack.c.b16 %v1247, %v1246
        %vm1256 = vcmask 523264
        %v1258 = vsel %vm1256, %v1218, 0
        %1260 = vmatprep.subr.bf16.mxu0 0
        %1261 = vmatpush1.bf16.msra.mxu0 %v1248
        %1262 = vmatprep.subr.bf16.mxu0 0
        %1263 = vmatpush1.bf16.msra.mxu0 %v1249
        %1264 = vmatprep.subr.bf16.mxu0 0
        %1265 = vmatpush1.bf16.msra.mxu0 %v1250
        %1266 = vmatprep.subr.bf16.mxu0 0
        %1267 = vmatpush1.bf16.msra.mxu0 %v1251
        %1268 = vmatprep.subr.bf16.mxu0 0
        %1269 = vmatpush1.bf16.msra.mxu0 0
        %1270 = vmatprep.subr.bf16.mxu0 0
        %1271 = vmatpush1.bf16.msra.mxu0 0
        %1272 = vmatprep.subr.bf16.mxu0 0
        %1273 = vmatpush1.bf16.msra.mxu0 0
        %1274 = vmatprep.subr.bf16.mxu0 0
        %1275 = vmatpush1.bf16.msra.mxu0 0
        %1276 = vmatprep.subr.bf16.mxu0 0
        %1277 = vmatpush1.bf16.msra.mxu0 0
        %1278 = vmatprep.subr.bf16.mxu0 0
        %1279 = vmatpush1.bf16.msra.mxu0 0
        %1280 = vmatprep.subr.bf16.mxu0 0
        %1281 = vmatpush1.bf16.msra.mxu0 0
        %1282 = vmatprep.subr.bf16.mxu0 0
        %1283 = vmatpush1.bf16.msra.mxu0 0
        %1284 = vmatprep.subr.bf16.mxu0 0
        %1285 = vmatpush1.bf16.msra.mxu0 0
        %1286 = vmatprep.subr.bf16.mxu0 0
        %1287 = vmatpush1.bf16.msra.mxu0 0
        %1288 = vmatprep.subr.bf16.mxu0 0
        %1289 = vmatpush1.bf16.msra.mxu0 0
        %1290 = vmatprep.subr.bf16.mxu0 0
        %1291 = vmatpush1.bf16.msra.mxu0 0
        %1292 = vmatprep.mubr.bf16.mxu0 0
        %1293 = vmatmul.mubr.bf16.gmra.mrb[0].mxu0 %v1258
        %v1294 = vpop.f32.mrb[0].mxu0
        %v1295 = vadd.f32 %v1231, %v1294
        %v1296 = vpop.f32.mrb[0].mxu0
        %v1297 = vpop.f32.mrb[0].mxu0
        %v1298 = vpop.f32.mrb[0].mxu0
        %1299 = vdwg.mxu0
        %v1300 = vadd.f32 %v1143, %v1295
        %v1301 = vld [vmem:[%s3 + $0x8] sm:$0x1]
        %v1302 = vld [vmem:[%s3 + $0x9] sm:$0x1]
        %v1303 = vsel %vm365, %v1300, 0.0
        %1304 = vadd.xlane.f32.xlu0 %v1303
        %v1305 = vpop.xlane.xlu0 %1304
        %v1306 = vmul.f32 %v1305, %v369
        %v1307 = vsub.f32 %v1300, %v1306
        %v1308 = vmul.f32 %v1307, %v1307
        %v1309 = vsel %vm365, %v1308, 0.0
        %1310 = vadd.xlane.f32.xlu0 %v1309
        %v1311 = vpop.xlane.xlu0 %1310
        %v1312 = vmul.f32 %v1311, %v369
        %v1313 = vadd.f32 %v1312, 1e-12
        %v1314 = vrsqrt.pop %v1313
        %v1315 = vmul.f32 %v1307, %v1314
        %v1316 = vlaneseq
        %v1317 = vshrl.u32 %v1316, 7
        %v1318 = vsub.s32 0, %v1317
        %v1319 = vrot.slane %v1301, %v1318
        %v1320 = vmul.f32 %v1315, %v1319
        %v1321 = vlaneseq
        %v1322 = vshrl.u32 %v1321, 7
        %v1323 = vsub.s32 0, %v1322
        %v1324 = vrot.slane %v1302, %v1323
        %v1325 = vadd.f32 %v1320, %v1324
        %v1326 = vpack.c.bf16 %v1325, %v1325
        %v1327 = vld [vmem:[#allocation9] sm:$0xf]
        %v1328 = vld [vmem:[#allocation9 + $0x4] sm:$0xf]
        %v1329 = vld [vmem:[#allocation9 + $0x8] sm:$0xf]
        %v1330 = vld [vmem:[#allocation9 + $0xc] sm:$0xf]
        %v1331 = vld [vmem:[%s3 + $0xa] sm:$0x1]
        %v1332 = vlaneseq
        %v1333 = vshrl.u32 %v1332, 7
        %v1334 = vsub.s32 0, %v1333
        %v1335 = vrot.slane %v1331, %v1334
        %v1340 = vunpack.c.l.b16 %v1327
        %v1341 = vunpack.c.l.b16 %v1328
        %v1342 = vunpack.c.l.b16 %v1329
        %v1343 = vunpack.c.l.b16 %v1330
        %v1344 = vpack.c.b16 %v1341, %v1340
        %v1345 = vpack.c.b16 %v1343, %v1342
        %v1349 = vsel %vm365, %v1326, 0
        %1351 = vmatprep.subr.bf16.mxu0 0
        %1352 = vmatpush1.bf16.msra.mxu0 %v1344
        %1353 = vmatprep.subr.bf16.mxu0 0
        %1354 = vmatpush1.bf16.msra.mxu0 %v1345
        %1355 = vmatprep.subr.bf16.mxu0 0
        %1356 = vmatpush1.bf16.msra.mxu0 0
        %1357 = vmatprep.subr.bf16.mxu0 0
        %1358 = vmatpush1.bf16.msra.mxu0 0
        %1359 = vmatprep.subr.bf16.mxu0 0
        %1360 = vmatpush1.bf16.msra.mxu0 0
        %1361 = vmatprep.subr.bf16.mxu0 0
        %1362 = vmatpush1.bf16.msra.mxu0 0
        %1363 = vmatprep.subr.bf16.mxu0 0
        %1364 = vmatpush1.bf16.msra.mxu0 0
        %1365 = vmatprep.subr.bf16.mxu0 0
        %1366 = vmatpush1.bf16.msra.mxu0 0
        %1367 = vmatprep.subr.bf16.mxu0 0
        %1368 = vmatpush1.bf16.msra.mxu0 0
        %1369 = vmatprep.subr.bf16.mxu0 0
        %1370 = vmatpush1.bf16.msra.mxu0 0
        %1371 = vmatprep.subr.bf16.mxu0 0
        %1372 = vmatpush1.bf16.msra.mxu0 0
        %1373 = vmatprep.subr.bf16.mxu0 0
        %1374 = vmatpush1.bf16.msra.mxu0 0
        %1375 = vmatprep.subr.bf16.mxu0 0
        %1376 = vmatpush1.bf16.msra.mxu0 0
        %1377 = vmatprep.subr.bf16.mxu0 0
        %1378 = vmatpush1.bf16.msra.mxu0 0
        %1379 = vmatprep.subr.bf16.mxu0 0
        %1380 = vmatpush1.bf16.msra.mxu0 0
        %1381 = vmatprep.subr.bf16.mxu0 0
        %1382 = vmatpush1.bf16.msra.mxu0 0
        %1383 = vmatprep.mubr.bf16.mxu0 0
        %1384 = vmatmul.mubr.bf16.gmra.mrb[0].mxu0 %v1349
        %v1385 = vpop.f32.mrb[0].mxu0
        %v1386 = vadd.f32 %v1335, %v1385
        %v1387 = vpop.f32.mrb[0].mxu0
        %v1388 = vpop.f32.mrb[0].mxu0
        %v1389 = vpop.f32.mrb[0].mxu0
        %1390 = vdwg.mxu0
        %v1391 = vmax.f32 %v1386, 0.0
        %1392 = vst [vmem:[%s353] sm:$0xff] %v1391
        %s1393 = sand.u32 %s212, 1
        %s1394 = scalar_lea.sflag [#allocation6], %s1393
        %s1395 = sand.u32 %s212, 1
        %s1396 = smul.addr %s1395, 8
        %s1397 = scalar_lea.vmem [#allocation10], %s1396
        // Predicated region
        $region65: #{tpu_custom_call.1} parent=51 // pred_check
          %p1398 = pneg %p222
        $region66: #{tpu_custom_call.1} parent=51 // pred_check_branch
          %1400 = sbr.rel (%p1398) target = $region68
        $region67: #{tpu_custom_call.1} parent=51 // pred_region
          %s1402 = ssub.s32 128, 128
          %1403 = vsyncadd %s1394, %s1402
          %s1404 = smul.addr %s26, 128
          %s1405 = scalar_lea.hbm %s9, %s1404
          %s1407 = sshll.u32 %s1397, 4
          %s1408 = int_to_ptr.vmem [resolvable:$true] %s1407
          %1410 = dma.vmem_to_hbm [thread:$0]  %s1408, 128, %s1405, %s1394
        $region68: #{tpu_custom_call.1} parent=51 // pred_fallthru
          _
      $region52: #{tpu_custom_call.1} parent=5 // pred_fallthru
        _
      %p1411 = scmp.le.s32.totalorder 2, %s21
      // Predicated region
      $region69: #{tpu_custom_call.1} parent=5 // pred_check
        %p1412 = pneg %p1411
      $region70: #{tpu_custom_call.1} parent=5 // pred_check_branch
        %1414 = sbr.rel (%p1412) target = $region72
      $region71: #{tpu_custom_call.1} parent=5 // pred_region
        %s1415 = ssub.s32 %s21, 2
        // Predicated region
        $region73: #{tpu_custom_call.1} parent=71 // pred_check
          %p1416 = pneg %p228
        $region74: #{tpu_custom_call.1} parent=71 // pred_check_branch
          %1418 = sbr.rel (%p1416) target = $region76
        $region75: #{tpu_custom_call.1} parent=71 // pred_region
          %s1419 = sand.u32 %s213, 1
          %s1420 = scalar_lea.sflag [#allocation6], %s1419
          %s1421 = sand.u32 %s213, 1
          %s1422 = smul.addr %s1421, 8
          %s1423 = scalar_lea.vmem [#allocation10], %s1422
          %1424 = dma.done %s1420, 128
        $region76: #{tpu_custom_call.1} parent=71 // pred_fallthru
          _
      $region72: #{tpu_custom_call.1} parent=5 // pred_fallthru
        _
    $region6: #{tpu_custom_call.1} parent=1 // loop_footer
      %s25 = sadd.s32 1, %s21
    $region7: #{tpu_custom_call.1} parent=1 // loop_footer_branch
      %20 = sbr.rel target = $region3
    $region8: #{tpu_custom_call.1} parent=1 // loop_exit
      _
    %1425 = vsyncpa [#allocation5], 1
    %s1426 = scalar_lea.sflag [#allocation5], 1
    %1427 = vsyncpa %s1426, 1
    %1428 = vsyncpa [#allocation8], 1
    %1429 = vsyncpa [#allocation6], 1
    %s1430 = scalar_lea.sflag [#allocation6], 1
    %1431 = vsyncpa %s1430, 1

</llo_original>
